<compile_context>
chip_gen: v7x
topology: tpu7x:2x2x1
jax: 0.10.0
libtpu: 0.0.40
codegen_flags: <defaults>
</compile_context>

<pallas_src>
import functools
from typing import NamedTuple

import numpy as np

import jax
import jax.numpy as jnp
from jax.experimental import pallas as pl
from jax.experimental.pallas import tpu as pltpu


class GraphBlocks(NamedTuple):
    a: jax.Array         # [N, N] bf16 dense weighted adjacency, A[dst, src]
    col_idx: jax.Array   # [nm * max_nnz] int32 compacted nonzero block-col ids
    count: jax.Array     # [nm] int32 number of nonzero blocks per dst-row block
    block_m: int
    block_k: int


def prepare_graph(adj, *, block_m=2048, block_k=2048):
    """One-time per-graph preprocessing, hoisted out of the jitted forward.

    Casts the adjacency to bf16 (halves the dominant HBM stream) and builds
    compacted nonzero block-column indices per dst-row block so zero A blocks
    are never DMA'd by the layer kernels.
    """
    N = adj.shape[0]
    bm = min(block_m, N)
    bk = min(block_k, N)
    assert N % bm == 0 and N % bk == 0, "N must be divisible by the block sizes"
    nm, nk = N // bm, N // bk

    a_bf = adj.astype(jnp.bfloat16)
    # Block nonzero structure computed from the bf16 matrix actually used.
    blk_nz = (jnp.abs(a_bf.astype(jnp.float32))
              .reshape(nm, bm, nk, bk).max(axis=(1, 3)) > 0.0)
    blk_np = np.asarray(jax.device_get(blk_nz))

    count_np = blk_np.sum(axis=1).astype(np.int32)              # [nm]
    max_nnz = max(1, int(count_np.max()))
    col_np = np.zeros((nm, max_nnz), dtype=np.int32)
    for m in range(nm):
        nz = np.flatnonzero(blk_np[m])
        if nz.size:
            col_np[m, :nz.size] = nz
            col_np[m, nz.size:] = nz[-1]   # pad w/ last valid -> DMA dedup'd
        # rows with zero nonzero blocks keep index 0; compute is gated off.

    # col_idx kept flat (1D) to avoid 2D SMEM padding waste.
    return GraphBlocks(a=a_bf,
                       col_idx=jnp.asarray(col_np.reshape(-1)),
                       count=jnp.asarray(count_np),
                       block_m=bm, block_k=bk)


def _gcn_mid_kernel(col_ref, cnt_ref,      # scalar prefetch (SMEM)
                    a_ref,                 # [BM, BK] bf16 adjacency tile
                    h_ref,                 # [BK, H]  bf16 source features xW+b
                    w_ref,                 # [H, H]   bf16 NEXT layer weight
                    b_ref,                 # [1, H]   f32  NEXT layer bias
                    we_ref,                # [H, 1]   f32  temp-scaled energy w
                    h_out_ref,             # [BM, H]  bf16 next-layer h
                    e_out_ref,             # [BM, 1]  f32  energy contribution
                    acc_ref):              # [BM, H]  f32  VMEM accumulator
    del col_ref  # only used by the index_maps
    m = pl.program_id(0)
    k = pl.program_id(1)

    @pl.when(k == 0)
    def _init():
        acc_ref[...] = jnp.zeros_like(acc_ref)

    # Padded (duplicate) steps beyond this row's nonzero-block count are skipped.
    @pl.when(k < cnt_ref[m])
    def _compute():
        acc_ref[...] += jnp.dot(a_ref[...], h_ref[...],
                                preferred_element_type=jnp.float32)

    @pl.when(k == pl.num_programs(1) - 1)
    def _finalize():
        x_new = jnp.maximum(acc_ref[...], 0.0)                       # ReLU
        # Per-layer energy contribution (temp already folded into we).
        e_out_ref[...] = jnp.dot(x_new, we_ref[...],
                                 preferred_element_type=jnp.float32)
        # Fuse next layer's linear: h_{i+1} = relu(A h_i) @ W_{i+1} + b_{i+1}.
        h_next = jnp.dot(x_new.astype(jnp.bfloat16), w_ref[...],
                         preferred_element_type=jnp.float32) + b_ref[...]
        h_out_ref[...] = h_next.astype(jnp.bfloat16)


def _gcn_last_kernel(col_ref, cnt_ref, a_ref, h_ref, we_ref,
                     e_out_ref, acc_ref):
    del col_ref
    m = pl.program_id(0)
    k = pl.program_id(1)

    @pl.when(k == 0)
    def _init():
        acc_ref[...] = jnp.zeros_like(acc_ref)

    @pl.when(k < cnt_ref[m])
    def _compute():
        acc_ref[...] += jnp.dot(a_ref[...], h_ref[...],
                                preferred_element_type=jnp.float32)

    @pl.when(k == pl.num_programs(1) - 1)
    def _finalize():
        x_new = jnp.maximum(acc_ref[...], 0.0)
        e_out_ref[...] = jnp.dot(x_new, we_ref[...],
                                 preferred_element_type=jnp.float32)


def gpr_sparse_forward(x, a_bf, col_idx, count, conv_w, conv_b, e_w, e_b, temp,
                       *, block_m, block_k):
    """Pallas forward for GPR_sparse (eval mode). Graph args come from prepare_graph."""
    N, H = x.shape
    L = conv_w.shape[0]
    bm, bk = block_m, block_k
    nm, nk = N // bm, N // bk
    assert count.shape[0] == nm
    mx = col_idx.shape[0] // nm              # static padded nnz per dst-row block

    x = x.astype(jnp.float32)
    w_bf = conv_w.astype(jnp.bfloat16)                            # [L, H, H]
    b_f32 = conv_b.astype(jnp.float32)                            # [L, H]
    we_scaled = (e_w * temp[:, None]).astype(jnp.float32)         # [L+1, H]
    bias_sum = jnp.sum(e_b * temp).astype(jnp.float32)            # all biases folded

    # Energy init and layer-0 linear in plain XLA (reads x once; tiny vs A).
    e = jnp.dot(x, we_scaled[0][:, None],
                precision=jax.lax.Precision.HIGHEST) + bias_sum    # [N, 1]
    h = (jnp.dot(x.astype(jnp.bfloat16), w_bf[0],
                 preferred_element_type=jnp.float32)
         + b_f32[0][None, :]).astype(jnp.bfloat16)                 # [N, H] bf16

    # Data-dependent index maps: only nonzero A blocks are DMA'd; padded
    # duplicate indices reuse the previous block's buffers (no re-fetch).
    a_map = lambda m, k, col, cnt: (m, col[m * mx + k])
    h_map = lambda m, k, col, cnt: (col[m * mx + k], 0)
    o_map = lambda m, k, col, cnt: (m, 0)
    r_map = lambda m, k, col, cnt: (0, 0)

    # Explicit VMEM budget from the tile plan; cap at 48 MiB for v7x (64 MiB
    # physical VMEM); v5e/v6e (128 MiB) have plenty of headroom.
    est = (2 * (bm * bk * 2          # A tiles (bf16), double buffered
                + bk * H * 2         # h source tiles (bf16)
                + bm * H * 2         # h_out tiles (bf16)
                + bm * 4)            # e_out tiles
           + H * H * 2 + 2 * H * 4   # resident W, b, we
           + bm * H * 4)             # f32 accumulator scratch
    vmem_limit = int(min(max(2 * est, 32 * 2**20), 48 * 2**20))
    cparams = pltpu.CompilerParams(
        dimension_semantics=("parallel", "arbitrary"),   # m parallel (megacore),
        vmem_limit_bytes=vmem_limit)                     # reduction axis last

    for i in range(L):
        we_i = we_scaled[i + 1][:, None]                           # [H, 1]
        if i + 1 < L:
            h, e_i = pl.pallas_call(
                _gcn_mid_kernel,
                out_shape=(jax.ShapeDtypeStruct((N, H), jnp.bfloat16),
                           jax.ShapeDtypeStruct((N, 1), jnp.float32)),
                grid_spec=pltpu.PrefetchScalarGridSpec(
                    num_scalar_prefetch=2,
                    grid=(nm, mx),
                    in_specs=(
                        pl.BlockSpec((bm, bk), a_map),   # A[dst-blk, src-blk]
                        pl.BlockSpec((bk, H), h_map),    # h of source blocks
                        pl.BlockSpec((H, H), r_map),     # W_{i+1} (resident)
                        pl.BlockSpec((1, H), r_map),     # b_{i+1} (resident)
                        pl.BlockSpec((H, 1), r_map),     # energy weight
                    ),
                    out_specs=(
                        pl.BlockSpec((bm, H), o_map),    # h_{i+1} (bf16)
                        pl.BlockSpec((bm, 1), o_map),    # energy contribution
                    ),
                    scratch_shapes=[pltpu.VMEM((bm, H), jnp.float32)],
                ),
                compiler_params=cparams,
            )(col_idx, count, a_bf, h, w_bf[i + 1],
              b_f32[i + 1][None, :], we_i)
        else:
            # Final layer: no next-layer h, no dead x writeback.
            e_i = pl.pallas_call(
                _gcn_last_kernel,
                out_shape=jax.ShapeDtypeStruct((N, 1), jnp.float32),
                grid_spec=pltpu.PrefetchScalarGridSpec(
                    num_scalar_prefetch=2,
                    grid=(nm, mx),
                    in_specs=(
                        pl.BlockSpec((bm, bk), a_map),
                        pl.BlockSpec((bk, H), h_map),
                        pl.BlockSpec((H, 1), r_map),
                    ),
                    out_specs=pl.BlockSpec((bm, 1), o_map),
                    scratch_shapes=[pltpu.VMEM((bm, H), jnp.float32)],
                ),
                compiler_params=cparams,
            )(col_idx, count, a_bf, h, we_i)
        # Per-layer energy contributions summed in XLA ((N,1) adds: negligible).
        e = e + e_i

    return e


def gpr_sparse_reference(x, adj, conv_w, conv_b, e_w, e_b, temp):
    """Pure-JAX f32 reference mirroring the PyTorch forward (eval mode)."""
    e = (x @ e_w[0][:, None] + e_b[0]) * temp[0]
    for i in range(conv_w.shape[0]):
        x = adj @ (x @ conv_w[i] + conv_b[i][None, :])
        x = jnp.maximum(x, 0.0)
        e = e + (x @ e_w[i + 1][:, None] + e_b[i + 1]) * temp[i + 1]
    return e


if __name__ == "__main__":
    hidden_channels = 32
    num_layers = 2
    num_nodes = 512
    BM = BK = 128     # small tiles so the toy exercises the grid + sparse skip;
                      # NOT representative for benchmarking (use N>=4096, 1024-2048 blocks)

    key = jax.random.PRNGKey(0)
    kx, ka, kmask, kblk, kw, kb, kew, keb = jax.random.split(key, 8)

    # Node features
    x = jax.random.normal(kx, (num_nodes, hidden_channels), dtype=jnp.float32)

    # Sparse weighted graph as dense adjacency, with block-level sparsity so the
    # DMA-skip path (padded / ragged block-column indices) is actually exercised.
    raw_w = jax.random.uniform(ka, (num_nodes, num_nodes), dtype=jnp.float32)
    edge_mask = (jax.random.uniform(kmask, (num_nodes, num_nodes)) < 0.5
                 ).astype(jnp.float32)
    blk_keep = (jax.random.uniform(kblk, (num_nodes // BM, num_nodes // BK)) < 0.7
                ).astype(jnp.float32)
    blk_mask = jnp.repeat(jnp.repeat(blk_keep, BM, axis=0), BK, axis=1)
    adj = raw_w * edge_mask * blk_mask            # A[dst, src] = edge weight

    # GCNConv_dgl parameters (Linear hidden->hidden), stored transposed: h = x @ W
    conv_w = 0.1 * jax.random.normal(
        kw, (num_layers, hidden_channels, hidden_channels), dtype=jnp.float32)
    conv_b = 0.1 * jax.random.normal(
        kb, (num_layers, hidden_channels), dtype=jnp.float32)

    # Energy linears (hidden -> 1), num_layers + 1 of them
    e_w = 0.1 * jax.random.normal(
        kew, (num_layers + 1, hidden_channels), dtype=jnp.float32)
    e_b = 0.1 * jax.random.normal(keb, (num_layers + 1,), dtype=jnp.float32)

    # GPR coefficients: temp = alpha * (1 - alpha)^k, temp[-1] = (1 - alpha)^L
    alpha = 0.1
    temp = alpha * (1.0 - alpha) ** jnp.arange(num_layers + 1, dtype=jnp.float32)
    temp = temp.at[-1].set((1.0 - alpha) ** num_layers)

    # One-time graph preprocessing (bf16 cast + compacted nonzero block indices),
    # hoisted out of the jitted per-call forward path.
    g = prepare_graph(adj, block_m=BM, block_k=BK)

    fwd = jax.jit(functools.partial(gpr_sparse_forward,
                                    block_m=g.block_m, block_k=g.block_k))
    out = jax.block_until_ready(
        fwd(x, g.a, g.col_idx, g.count, conv_w, conv_b, e_w, e_b, temp))

    ref = gpr_sparse_reference(x, adj, conv_w, conv_b, e_w, e_b, temp)

    assert out.shape == (num_nodes, 1)
    # bf16 matmul operands (A, W, h) -> compare against the f32 reference with
    # scale-aware mixed-precision tolerances.
    max_abs = jnp.max(jnp.abs(out - ref))
    scale = jnp.max(jnp.abs(ref))
    rel_l2 = jnp.linalg.norm(out - ref) / jnp.linalg.norm(ref)
    assert rel_l2 < 3e-2 and max_abs < 5e-2 * scale, (
        float(rel_l2), float(max_abs), float(scale))

    print("KERNEL_OK")
</pallas_src>

<mosaic_0001>
module attributes {stable_mosaic.version = 11 : i64} {
  func.func @_gcn_mid_kernel(%arg0: i32, %arg1: i32, %arg2: memref<12xi32, #tpu.memory_space<smem>>, %arg3: memref<4xi32, #tpu.memory_space<smem>>, %arg4: memref<128x128xbf16, #tpu.memory_space<vmem>>, %arg5: memref<128x32xbf16, #tpu.memory_space<vmem>>, %arg6: memref<32x32xbf16, #tpu.memory_space<vmem>>, %arg7: memref<1x32xf32, #tpu.memory_space<vmem>>, %arg8: memref<32x1xf32, #tpu.memory_space<vmem>>, %arg9: memref<128x32xbf16, #tpu.memory_space<vmem>>, %arg10: memref<128x1xf32, #tpu.memory_space<vmem>>, %arg11: memref<128x32xf32, #tpu.memory_space<vmem>>) attributes {dimension_semantics = [#tpu.dimension_semantics<parallel>, #tpu.dimension_semantics<arbitrary>], iteration_bounds = array<i64: 4, 3>, scalar_prefetch = 2 : i64, scratch_operands = 1 : i64, tpu.core_type = #tpu.core_type<tc>, window_params = [{transform_indices = @transform_0, window_bounds = array<i64: 128, 128>}, {transform_indices = @transform_1, window_bounds = array<i64: 128, 32>}, {pipeline_mode = #tpu.pipeline_mode<synchronous>, transform_indices = @transform_2, window_bounds = array<i64: 32, 32>}, {pipeline_mode = #tpu.pipeline_mode<synchronous>, transform_indices = @transform_3, window_bounds = array<i64: 1, 32>}, {pipeline_mode = #tpu.pipeline_mode<synchronous>, transform_indices = @transform_4, window_bounds = array<i64: 32, 1>}, {transform_indices = @transform_5, window_bounds = array<i64: 128, 32>}, {transform_indices = @transform_6, window_bounds = array<i64: 128, 1>}]} {
    %c0_i32 = arith.constant 0 : i32
    %0 = arith.cmpi eq, %arg1, %c0_i32 : i32
    %1 = arith.extui %0 : i1 to i32
    %c0_i32_0 = arith.constant 0 : i32
    %2 = arith.cmpi ne, %1, %c0_i32_0 : i32
    scf.if %2 {
      %cst = arith.constant 0.000000e+00 : f32
      %11 = vector.broadcast %cst : f32 to vector<128x32xf32>
      %c0 = arith.constant 0 : index
      %c0_3 = arith.constant 0 : index
      %12 = vector.load %arg11[%c0, %c0_3] : memref<128x32xf32, #tpu.memory_space<vmem>>, vector<128x32xf32>
      tpu.vector_store %arg11[%c0, %c0_3], %11 {strides = array<i32>} : memref<128x32xf32, #tpu.memory_space<vmem>>, vector<128x32xf32>,
    } else {
    }
    %3 = arith.index_cast %arg0 : i32 to index
    %4 = memref.load %arg3[%3] : memref<4xi32, #tpu.memory_space<smem>>
    %5 = arith.cmpi slt, %arg1, %4 : i32
    %6 = arith.extui %5 : i1 to i32
    %c0_i32_1 = arith.constant 0 : i32
    %7 = arith.cmpi ne, %6, %c0_i32_1 : i32
    scf.if %7 {
      %c0 = arith.constant 0 : index
      %c0_3 = arith.constant 0 : index
      %11 = vector.load %arg11[%c0, %c0_3] : memref<128x32xf32, #tpu.memory_space<vmem>>, vector<128x32xf32>
      %c0_4 = arith.constant 0 : index
      %c0_5 = arith.constant 0 : index
      %12 = vector.load %arg4[%c0_4, %c0_5] : memref<128x128xbf16, #tpu.memory_space<vmem>>, vector<128x128xbf16>
      %c0_6 = arith.constant 0 : index
      %c0_7 = arith.constant 0 : index
      %13 = vector.load %arg5[%c0_6, %c0_7] : memref<128x32xbf16, #tpu.memory_space<vmem>>, vector<128x32xbf16>
      %cst = arith.constant dense<0.000000e+00> : vector<128x32xf32>
      %14 = tpu.matmul %12, %13, %cst {dimension_numbers = #tpu.dot_dimension_numbers<[1], [0], [0], [1], [0, 0, 1, 1], [], []>} : vector<128x128xbf16>, vector<128x32xbf16>, vector<128x32xf32> -> vector<128x32xf32>
      %15 = arith.addf %11, %14 : vector<128x32xf32>
      %c0_8 = arith.constant 0 : index
      %c0_9 = arith.constant 0 : index
      %16 = vector.load %arg11[%c0_8, %c0_9] : memref<128x32xf32, #tpu.memory_space<vmem>>, vector<128x32xf32>
      tpu.vector_store %arg11[%c0_8, %c0_9], %15 {strides = array<i32>} : memref<128x32xf32, #tpu.memory_space<vmem>>, vector<128x32xf32>,
    } else {
    }
    %c2_i32 = arith.constant 2 : i32
    %8 = arith.cmpi eq, %arg1, %c2_i32 : i32
    %9 = arith.extui %8 : i1 to i32
    %c0_i32_2 = arith.constant 0 : i32
    %10 = arith.cmpi ne, %9, %c0_i32_2 : i32
    scf.if %10 {
      %c0 = arith.constant 0 : index
      %c0_3 = arith.constant 0 : index
      %11 = vector.load %arg11[%c0, %c0_3] : memref<128x32xf32, #tpu.memory_space<vmem>>, vector<128x32xf32>
      %cst = arith.constant 0.000000e+00 : f32
      %12 = vector.broadcast %cst : f32 to vector<128x32xf32>
      %13 = arith.maximumf %11, %12 : vector<128x32xf32>
      %c0_4 = arith.constant 0 : index
      %c0_5 = arith.constant 0 : index
      %14 = vector.load %arg8[%c0_4, %c0_5] : memref<32x1xf32, #tpu.memory_space<vmem>>, vector<32x1xf32>
      %cst_6 = arith.constant dense<0.000000e+00> : vector<128x1xf32>
      %15 = tpu.matmul %13, %14, %cst_6 {dimension_numbers = #tpu.dot_dimension_numbers<[1], [0], [0], [1], [0, 0, 1, 1], [], []>} : vector<128x32xf32>, vector<32x1xf32>, vector<128x1xf32> -> vector<128x1xf32>
      %c0_7 = arith.constant 0 : index
      %c0_8 = arith.constant 0 : index
      %16 = vector.load %arg10[%c0_7, %c0_8] : memref<128x1xf32, #tpu.memory_space<vmem>>, vector<128x1xf32>
      tpu.vector_store %arg10[%c0_7, %c0_8], %15 {strides = array<i32>} : memref<128x1xf32, #tpu.memory_space<vmem>>, vector<128x1xf32>,
      %17 = arith.truncf %13 : vector<128x32xf32> to vector<128x32xbf16>
      %c0_9 = arith.constant 0 : index
      %c0_10 = arith.constant 0 : index
      %18 = vector.load %arg6[%c0_9, %c0_10] : memref<32x32xbf16, #tpu.memory_space<vmem>>, vector<32x32xbf16>
      %cst_11 = arith.constant dense<0.000000e+00> : vector<128x32xf32>
      %19 = tpu.matmul %17, %18, %cst_11 {dimension_numbers = #tpu.dot_dimension_numbers<[1], [0], [0], [1], [0, 0, 1, 1], [], []>} : vector<128x32xbf16>, vector<32x32xbf16>, vector<128x32xf32> -> vector<128x32xf32>
      %c0_12 = arith.constant 0 : index
      %c0_13 = arith.constant 0 : index
      %20 = vector.load %arg7[%c0_12, %c0_13] : memref<1x32xf32, #tpu.memory_space<vmem>>, vector<1x32xf32>
      %21 = vector.broadcast %20 : vector<1x32xf32> to vector<128x32xf32>
      %22 = arith.addf %19, %21 : vector<128x32xf32>
      %23 = arith.truncf %22 : vector<128x32xf32> to vector<128x32xbf16>
      %c0_14 = arith.constant 0 : index
      %c0_15 = arith.constant 0 : index
      %24 = vector.load %arg9[%c0_14, %c0_15] : memref<128x32xbf16, #tpu.memory_space<vmem>>, vector<128x32xbf16>
      tpu.vector_store %arg9[%c0_14, %c0_15], %23 {strides = array<i32>} : memref<128x32xbf16, #tpu.memory_space<vmem>>, vector<128x32xbf16>,
    } else {
    }
    return
  }
  func.func @transform_0(%arg0: i32, %arg1: i32, %arg2: memref<12xi32, #tpu.memory_space<smem>>, %arg3: memref<4xi32, #tpu.memory_space<smem>>) -> (i32, i32) {
    %c3_i32 = arith.constant 3 : i32
    %0 = arith.muli %arg0, %c3_i32 : i32
    %1 = arith.addi %0, %arg1 : i32
    %2 = arith.index_cast %1 : i32 to index
    %3 = memref.load %arg2[%2] : memref<12xi32, #tpu.memory_space<smem>>
    %c0_i32 = arith.constant 0 : i32
    return %arg0, %3 : i32, i32
  }
  func.func @transform_1(%arg0: i32, %arg1: i32, %arg2: memref<12xi32, #tpu.memory_space<smem>>, %arg3: memref<4xi32, #tpu.memory_space<smem>>) -> (i32, i32) {
    %c3_i32 = arith.constant 3 : i32
    %0 = arith.muli %arg0, %c3_i32 : i32
    %1 = arith.addi %0, %arg1 : i32
    %2 = arith.index_cast %1 : i32 to index
    %3 = memref.load %arg2[%2] : memref<12xi32, #tpu.memory_space<smem>>
    %c0_i32 = arith.constant 0 : i32
    %c0_i32_0 = arith.constant 0 : i32
    return %3, %c0_i32 : i32, i32
  }
  func.func @transform_2(%arg0: i32, %arg1: i32, %arg2: memref<12xi32, #tpu.memory_space<smem>>, %arg3: memref<4xi32, #tpu.memory_space<smem>>) -> (i32, i32) {
    %c0_i32 = arith.constant 0 : i32
    %c0_i32_0 = arith.constant 0 : i32
    %c0_i32_1 = arith.constant 0 : i32
    return %c0_i32, %c0_i32_0 : i32, i32
  }
  func.func @transform_3(%arg0: i32, %arg1: i32, %arg2: memref<12xi32, #tpu.memory_space<smem>>, %arg3: memref<4xi32, #tpu.memory_space<smem>>) -> (i32, i32) {
    %c0_i32 = arith.constant 0 : i32
    %c0_i32_0 = arith.constant 0 : i32
    %c0_i32_1 = arith.constant 0 : i32
    return %c0_i32, %c0_i32_0 : i32, i32
  }
  func.func @transform_4(%arg0: i32, %arg1: i32, %arg2: memref<12xi32, #tpu.memory_space<smem>>, %arg3: memref<4xi32, #tpu.memory_space<smem>>) -> (i32, i32) {
    %c0_i32 = arith.constant 0 : i32
    %c0_i32_0 = arith.constant 0 : i32
    %c0_i32_1 = arith.constant 0 : i32
    return %c0_i32, %c0_i32_0 : i32, i32
  }
  func.func @transform_5(%arg0: i32, %arg1: i32, %arg2: memref<12xi32, #tpu.memory_space<smem>>, %arg3: memref<4xi32, #tpu.memory_space<smem>>) -> (i32, i32) {
    %c0_i32 = arith.constant 0 : i32
    %c0_i32_0 = arith.constant 0 : i32
    return %arg0, %c0_i32 : i32, i32
  }
  func.func @transform_6(%arg0: i32, %arg1: i32, %arg2: memref<12xi32, #tpu.memory_space<smem>>, %arg3: memref<4xi32, #tpu.memory_space<smem>>) -> (i32, i32) {
    %c0_i32 = arith.constant 0 : i32
    %c0_i32_0 = arith.constant 0 : i32
    return %arg0, %c0_i32 : i32, i32
  }
}

module attributes {stable_mosaic.version = 11 : i64} {
  func.func @_gcn_last_kernel(%arg0: i32, %arg1: i32, %arg2: memref<12xi32, #tpu.memory_space<smem>>, %arg3: memref<4xi32, #tpu.memory_space<smem>>, %arg4: memref<128x128xbf16, #tpu.memory_space<vmem>>, %arg5: memref<128x32xbf16, #tpu.memory_space<vmem>>, %arg6: memref<32x1xf32, #tpu.memory_space<vmem>>, %arg7: memref<128x1xf32, #tpu.memory_space<vmem>>, %arg8: memref<128x32xf32, #tpu.memory_space<vmem>>) attributes {dimension_semantics = [#tpu.dimension_semantics<parallel>, #tpu.dimension_semantics<arbitrary>], iteration_bounds = array<i64: 4, 3>, scalar_prefetch = 2 : i64, scratch_operands = 1 : i64, tpu.core_type = #tpu.core_type<tc>, window_params = [{transform_indices = @transform_0, window_bounds = array<i64: 128, 128>}, {transform_indices = @transform_1, window_bounds = array<i64: 128, 32>}, {pipeline_mode = #tpu.pipeline_mode<synchronous>, transform_indices = @transform_2, window_bounds = array<i64: 32, 1>}, {transform_indices = @transform_3, window_bounds = array<i64: 128, 1>}]} {
    %c0_i32 = arith.constant 0 : i32
    %0 = arith.cmpi eq, %arg1, %c0_i32 : i32
    %1 = arith.extui %0 : i1 to i32
    %c0_i32_0 = arith.constant 0 : i32
    %2 = arith.cmpi ne, %1, %c0_i32_0 : i32
    scf.if %2 {
      %cst = arith.constant 0.000000e+00 : f32
      %11 = vector.broadcast %cst : f32 to vector<128x32xf32>
      %c0 = arith.constant 0 : index
      %c0_3 = arith.constant 0 : index
      %12 = vector.load %arg8[%c0, %c0_3] : memref<128x32xf32, #tpu.memory_space<vmem>>, vector<128x32xf32>
      tpu.vector_store %arg8[%c0, %c0_3], %11 {strides = array<i32>} : memref<128x32xf32, #tpu.memory_space<vmem>>, vector<128x32xf32>,
    } else {
    }
    %3 = arith.index_cast %arg0 : i32 to index
    %4 = memref.load %arg3[%3] : memref<4xi32, #tpu.memory_space<smem>>
    %5 = arith.cmpi slt, %arg1, %4 : i32
    %6 = arith.extui %5 : i1 to i32
    %c0_i32_1 = arith.constant 0 : i32
    %7 = arith.cmpi ne, %6, %c0_i32_1 : i32
    scf.if %7 {
      %c0 = arith.constant 0 : index
      %c0_3 = arith.constant 0 : index
      %11 = vector.load %arg8[%c0, %c0_3] : memref<128x32xf32, #tpu.memory_space<vmem>>, vector<128x32xf32>
      %c0_4 = arith.constant 0 : index
      %c0_5 = arith.constant 0 : index
      %12 = vector.load %arg4[%c0_4, %c0_5] : memref<128x128xbf16, #tpu.memory_space<vmem>>, vector<128x128xbf16>
      %c0_6 = arith.constant 0 : index
      %c0_7 = arith.constant 0 : index
      %13 = vector.load %arg5[%c0_6, %c0_7] : memref<128x32xbf16, #tpu.memory_space<vmem>>, vector<128x32xbf16>
      %cst = arith.constant dense<0.000000e+00> : vector<128x32xf32>
      %14 = tpu.matmul %12, %13, %cst {dimension_numbers = #tpu.dot_dimension_numbers<[1], [0], [0], [1], [0, 0, 1, 1], [], []>} : vector<128x128xbf16>, vector<128x32xbf16>, vector<128x32xf32> -> vector<128x32xf32>
      %15 = arith.addf %11, %14 : vector<128x32xf32>
      %c0_8 = arith.constant 0 : index
      %c0_9 = arith.constant 0 : index
      %16 = vector.load %arg8[%c0_8, %c0_9] : memref<128x32xf32, #tpu.memory_space<vmem>>, vector<128x32xf32>
      tpu.vector_store %arg8[%c0_8, %c0_9], %15 {strides = array<i32>} : memref<128x32xf32, #tpu.memory_space<vmem>>, vector<128x32xf32>,
    } else {
    }
    %c2_i32 = arith.constant 2 : i32
    %8 = arith.cmpi eq, %arg1, %c2_i32 : i32
    %9 = arith.extui %8 : i1 to i32
    %c0_i32_2 = arith.constant 0 : i32
    %10 = arith.cmpi ne, %9, %c0_i32_2 : i32
    scf.if %10 {
      %c0 = arith.constant 0 : index
      %c0_3 = arith.constant 0 : index
      %11 = vector.load %arg8[%c0, %c0_3] : memref<128x32xf32, #tpu.memory_space<vmem>>, vector<128x32xf32>
      %cst = arith.constant 0.000000e+00 : f32
      %12 = vector.broadcast %cst : f32 to vector<128x32xf32>
      %13 = arith.maximumf %11, %12 : vector<128x32xf32>
      %c0_4 = arith.constant 0 : index
      %c0_5 = arith.constant 0 : index
      %14 = vector.load %arg6[%c0_4, %c0_5] : memref<32x1xf32, #tpu.memory_space<vmem>>, vector<32x1xf32>
      %cst_6 = arith.constant dense<0.000000e+00> : vector<128x1xf32>
      %15 = tpu.matmul %13, %14, %cst_6 {dimension_numbers = #tpu.dot_dimension_numbers<[1], [0], [0], [1], [0, 0, 1, 1], [], []>} : vector<128x32xf32>, vector<32x1xf32>, vector<128x1xf32> -> vector<128x1xf32>
      %c0_7 = arith.constant 0 : index
      %c0_8 = arith.constant 0 : index
      %16 = vector.load %arg7[%c0_7, %c0_8] : memref<128x1xf32, #tpu.memory_space<vmem>>, vector<128x1xf32>
      tpu.vector_store %arg7[%c0_7, %c0_8], %15 {strides = array<i32>} : memref<128x1xf32, #tpu.memory_space<vmem>>, vector<128x1xf32>,
    } else {
    }
    return
  }
  func.func @transform_0(%arg0: i32, %arg1: i32, %arg2: memref<12xi32, #tpu.memory_space<smem>>, %arg3: memref<4xi32, #tpu.memory_space<smem>>) -> (i32, i32) {
    %c3_i32 = arith.constant 3 : i32
    %0 = arith.muli %arg0, %c3_i32 : i32
    %1 = arith.addi %0, %arg1 : i32
    %2 = arith.index_cast %1 : i32 to index
    %3 = memref.load %arg2[%2] : memref<12xi32, #tpu.memory_space<smem>>
    %c0_i32 = arith.constant 0 : i32
    return %arg0, %3 : i32, i32
  }
  func.func @transform_1(%arg0: i32, %arg1: i32, %arg2: memref<12xi32, #tpu.memory_space<smem>>, %arg3: memref<4xi32, #tpu.memory_space<smem>>) -> (i32, i32) {
    %c3_i32 = arith.constant 3 : i32
    %0 = arith.muli %arg0, %c3_i32 : i32
    %1 = arith.addi %0, %arg1 : i32
    %2 = arith.index_cast %1 : i32 to index
    %3 = memref.load %arg2[%2] : memref<12xi32, #tpu.memory_space<smem>>
    %c0_i32 = arith.constant 0 : i32
    %c0_i32_0 = arith.constant 0 : i32
    return %3, %c0_i32 : i32, i32
  }
  func.func @transform_2(%arg0: i32, %arg1: i32, %arg2: memref<12xi32, #tpu.memory_space<smem>>, %arg3: memref<4xi32, #tpu.memory_space<smem>>) -> (i32, i32) {
    %c0_i32 = arith.constant 0 : i32
    %c0_i32_0 = arith.constant 0 : i32
    %c0_i32_1 = arith.constant 0 : i32
    return %c0_i32, %c0_i32_0 : i32, i32
  }
  func.func @transform_3(%arg0: i32, %arg1: i32, %arg2: memref<12xi32, #tpu.memory_space<smem>>, %arg3: memref<4xi32, #tpu.memory_space<smem>>) -> (i32, i32) {
    %c0_i32 = arith.constant 0 : i32
    %c0_i32_0 = arith.constant 0 : i32
    return %arg0, %c0_i32 : i32, i32
  }
}

</mosaic_0001>

<llo_original>
// kernel: gpr_sparse_forward.3
$region0: #{gpr_sparse_forward.3}
  #allocation0 [shape = 'u32[]', space=smem, size = 0x4, offset = 0x4, fixed_abs, tag = 'smem constant byte address 0x4 - core index']
  #allocation1 [shape = 'u32[144,128]{1,0:T(1,128)}', space=vmem, size = 0x12000, scoped, tag = 'internal scratch']
  #allocation2 [shape = 'f32[128,32]{1,0:T(8,128)}', space=vmem, size = 0x10000, scoped, tag = 'scratch operand']
  #allocation3 [shape = 's32[1]{0}', space=sflag, size = 0x4, scoped, tag = 'scoped memory for gpr_sparse_forward.3']
  #allocation4 [shape = 'u8[512]{0}', space=smem, size = 0x200, scoped, tag = 'prefetched SMEM operand 0']
  #allocation5 [shape = 'u8[512]{0}', space=smem, size = 0x200, scoped, tag = 'prefetched SMEM operand 1']
  %s0 = inlined_call_operand.vmem [shape: s32[12], index: 0, kind: input, shape index: {}]
  %s1 = inlined_call_operand.vmem [shape: s32[4], index: 1, kind: input, shape index: {}]
  %s2 = inlined_call_operand.vmem [shape: bf16[512,512], index: 2, kind: input, shape index: {}]
  %s3 = inlined_call_operand.vmem [shape: bf16[512,32], index: 3, kind: input, shape index: {}]
  %s4 = inlined_call_operand.vmem [shape: f32[32,1], index: 4, kind: input, shape index: {}]
  %s5 = inlined_call_operand.vmem [shape: f32[512,1], index: 5, kind: output, shape index: {}]
  %s6 = sld [smem:[#allocation0]]
  $region98: #{gpr_sparse_forward.3} parent=0
    _
  %s8 = ssub.s32 1, %s6
  %s9 = scalar_select 0, %s8, %s6
  %s10 = sshll.u32 %s0, 4
  %s11 = int_to_ptr.vmem [resolvable:$true] %s10
  %13 = dma.vmem_to_smem %s11, 16, [#allocation4], [#allocation3]
  %s14 = sshll.u32 %s1, 4
  %s15 = int_to_ptr.vmem [resolvable:$true] %s14
  %17 = dma.vmem_to_smem %s15, 16, [#allocation5], [#allocation3]
  %18 = dma.done [#allocation3], 32
  %19 = sfence
  $region1: #{gpr_sparse_forward.3} parent=0
    #allocation6 [shape = 'u8[65536]{0}', space=vmem, size = 0x10000, scoped, tag = 'input window, operand 2']
    loop: start=0, step=1, limit=14
    $region2: #{gpr_sparse_forward.3} parent=1 // loop_pre_header
      _
    $region3: #{gpr_sparse_forward.3} parent=1 // loop_header
      %s21 = sphi 0, %s25
      %p22 = scmp.ge.s32.totalorder %s21, 14
      %s28 = sphi 0, %s40
      %s29 = sphi 0, %s36
      %s30 = sphi 0, %s28
      %s31 = sphi 0, %s29
      %s32 = sphi 0, %s30
      %s33 = sphi 0, %s31
      %s51 = sphi 0, %s53
      %s54 = sphi 0, %s51
      %s55 = sphi 0, %s54
      %s71 = sphi 0, %s55
      %s83 = sphi 0, %s85
      %s86 = sphi 0, %s83
      %s87 = sphi 0, %s86
      %s103 = sphi 0, %s87
      %s107 = sphi 0, %s107
      %s109 = sphi 0, %s107
      %s110 = sphi 0, %s109
      %s124 = sphi 0, %s110
      %s130 = sphi 0, %s132
      %s133 = sphi 0, %s130
      %s134 = sphi 0, %s133
      %s150 = sphi 0, %s134
    $region4: #{gpr_sparse_forward.3} parent=1 // loop_header_branch
      %24 = sbr.rel (%p22) target = $region8
    $region5: #{gpr_sparse_forward.3} parent=1 // loop_body
      %s26 = ssub.s32 %s21, 1
      %s27 = ssub.s32 %s21, 2
      %s34 = sadd.s32 1, %s29
      %p35 = scmp.ge.s32.totalorder %s34, 3
      %s36 = scalar_select %p35, 0, %s34
      %s37 = sadd.s32 1, %s28
      %s38 = scalar_select %p35, %s37, %s28
      %p39 = scmp.ge.s32.totalorder %s38, 4
      %s40 = scalar_select %p39, 0, %s38
      %s41 = smul.u32 %s28, 3
      %s42 = sadd.s32 %s41, %s29
      %s43 = sld [smem:[#allocation4 + %s42]]
      %s44 = smul.u32 %s40, 3
      %s45 = sadd.s32 %s44, %s36
      %s46 = sld [smem:[#allocation4 + %s45]]
      %s47 = ssub.s32 %s28, %s40
      %s48 = ssub.s32 %s43, %s46
      %s49 = sor.u32 %s47, %s48
      %p50 = scmp.eq.s32.totalorder %s49, 0
      %s52 = sadd.s32 %s51, 1
      %s53 = scalar_select %p50, %s51, %s52
      %p56 = pneg %p50
      %p57 = scmp.eq.s32.totalorder %s21, 11
      %p58 = por %p56, %p57
      %p59 = scmp.ne.s32.totalorder %s51, %s54
      %p60 = scmp.eq.s32.totalorder %s21, 0
      %p61 = por %p59, %p60
      %p62 = scmp.ne.s32.totalorder %s51, %s54
      %p63 = scmp.eq.s32.totalorder %s26, 11
      %p64 = por %p62, %p63
      %p65 = scmp.ne.s32.totalorder %s54, %s55
      %p66 = scmp.eq.s32.totalorder %s26, 0
      %p67 = por %p65, %p66
      %p68 = scmp.ne.s32.totalorder %s54, %s55
      %p69 = scmp.eq.s32.totalorder %s27, 11
      %p70 = por %p68, %p69
      %p72 = scmp.ne.s32.totalorder %s55, %s71
      %p73 = scmp.eq.s32.totalorder %s27, 0
      %p74 = por %p72, %p73
      %s75 = smul.u32 %s28, 3
      %s76 = sadd.s32 %s75, %s29
      %s77 = sld [smem:[#allocation4 + %s76]]
      %s78 = smul.u32 %s40, 3
      %s79 = sadd.s32 %s78, %s36
      %s80 = sld [smem:[#allocation4 + %s79]]
      %s81 = ssub.s32 %s77, %s80
      %p82 = scmp.eq.s32.totalorder %s81, 0
      %s84 = sadd.s32 %s83, 1
      %s85 = scalar_select %p82, %s83, %s84
      %p88 = pneg %p82
      %p89 = scmp.eq.s32.totalorder %s21, 11
      %p90 = por %p88, %p89
      %p91 = scmp.ne.s32.totalorder %s83, %s86
      %p92 = scmp.eq.s32.totalorder %s21, 0
      %p93 = por %p91, %p92
      %p94 = scmp.ne.s32.totalorder %s83, %s86
      %p95 = scmp.eq.s32.totalorder %s26, 11
      %p96 = por %p94, %p95
      %p97 = scmp.ne.s32.totalorder %s86, %s87
      %p98 = scmp.eq.s32.totalorder %s26, 0
      %p99 = por %p97, %p98
      %p100 = scmp.ne.s32.totalorder %s86, %s87
      %p101 = scmp.eq.s32.totalorder %s27, 11
      %p102 = por %p100, %p101
      %p104 = scmp.ne.s32.totalorder %s87, %s103
      %p105 = scmp.eq.s32.totalorder %s27, 0
      %p106 = por %p104, %p105
      %s108 = sadd.s32 %s107, 1
      %p111 = scmp.eq.s32.totalorder %s21, 11
      %p112 = scmp.ne.s32.totalorder %s107, %s109
      %p113 = scmp.eq.s32.totalorder %s21, 0
      %p114 = por %p112, %p113
      %p115 = scmp.ne.s32.totalorder %s107, %s109
      %p116 = scmp.eq.s32.totalorder %s26, 11
      %p117 = por %p115, %p116
      %p118 = scmp.ne.s32.totalorder %s109, %s110
      %p119 = scmp.eq.s32.totalorder %s26, 0
      %p120 = por %p118, %p119
      %p121 = scmp.ne.s32.totalorder %s109, %s110
      %p122 = scmp.eq.s32.totalorder %s27, 11
      %p123 = por %p121, %p122
      %p125 = scmp.ne.s32.totalorder %s110, %s124
      %p126 = scmp.eq.s32.totalorder %s27, 0
      %p127 = por %p125, %p126
      %s128 = ssub.s32 %s28, %s40
      %p129 = scmp.eq.s32.totalorder %s128, 0
      %s131 = sadd.s32 %s130, 1
      %s132 = scalar_select %p129, %s130, %s131
      %p135 = pneg %p129
      %p136 = scmp.eq.s32.totalorder %s21, 11
      %p137 = por %p135, %p136
      %p138 = scmp.ne.s32.totalorder %s130, %s133
      %p139 = scmp.eq.s32.totalorder %s21, 0
      %p140 = por %p138, %p139
      %p141 = scmp.ne.s32.totalorder %s130, %s133
      %p142 = scmp.eq.s32.totalorder %s26, 11
      %p143 = por %p141, %p142
      %p144 = scmp.ne.s32.totalorder %s133, %s134
      %p145 = scmp.eq.s32.totalorder %s26, 0
      %p146 = por %p144, %p145
      %p147 = scmp.ne.s32.totalorder %s133, %s134
      %p148 = scmp.eq.s32.totalorder %s27, 11
      %p149 = por %p147, %p148
      %p151 = scmp.ne.s32.totalorder %s134, %s150
      %p152 = scmp.eq.s32.totalorder %s27, 0
      %p153 = por %p151, %p152
      %p154 = scmp.le.s32.totalorder 1, %s21
      %p155 = scmp.lt.s32.totalorder %s21, 13
      %p156 = pnand %p154, %p155
      %p157 = pneg %p156
      // Predicated region
      $region9: #{gpr_sparse_forward.3} parent=5 // pred_check
        _
      $region10: #{gpr_sparse_forward.3} parent=5 // pred_check_branch
        %159 = sbr.rel (%p156) target = $region12
      $region11: #{gpr_sparse_forward.3} parent=5 // pred_region
        %s160 = ssub.s32 %s21, 1
        // Predicated region
        $region13: #{gpr_sparse_forward.3} parent=11 // pred_check
          %p161 = pneg %p120
        $region14: #{gpr_sparse_forward.3} parent=11 // pred_check_branch
          %163 = sbr.rel (%p161) target = $region16
        $region15: #{gpr_sparse_forward.3} parent=11 // pred_region
          _
        $region16: #{gpr_sparse_forward.3} parent=11 // pred_fallthru
          _
      $region12: #{gpr_sparse_forward.3} parent=5 // pred_fallthru
        _
      %p164 = scmp.lt.s32.totalorder %s21, 12
      // Predicated region
      $region17: #{gpr_sparse_forward.3} parent=5 // pred_check
        %p165 = pneg %p164
      $region18: #{gpr_sparse_forward.3} parent=5 // pred_check_branch
        %167 = sbr.rel (%p165) target = $region20
      $region19: #{gpr_sparse_forward.3} parent=5 // pred_region
        // Predicated region
        $region21: #{gpr_sparse_forward.3} parent=19 // pred_check
          %p168 = pneg %p61
        $region22: #{gpr_sparse_forward.3} parent=19 // pred_check_branch
          %170 = sbr.rel (%p168) target = $region24
        $region23: #{gpr_sparse_forward.3} parent=19 // pred_region
          %s171 = sand.u32 %s51, 1
          %s172 = sand.u32 %s51, 1
          %s173 = smul.addr %s172, 64
          %s174 = scalar_lea.vmem [#allocation6], %s173
          %s175 = smul.u32 %s28, 3
          %s176 = sadd.s32 %s175, %s29
          %s177 = sld [smem:[#allocation4 + %s176]]
          %s178 = smul.u32 16, %s28
          %s179 = smul.addr %s178, 4
          %s180 = sadd.s32 %s177, %s179
          %s181 = smul.addr %s180, 4
          %s182 = scalar_lea.vmem %s2, %s181
          // Predicated region
          $region25: #{gpr_sparse_forward.3} parent=23 // pred_check
            _
          $region26: #{gpr_sparse_forward.3} parent=23 // pred_check_branch
            %184 = sbr.rel (0) target = $region28
          $region27: #{gpr_sparse_forward.3} parent=23 // pred_region
            // Predicated region
            $region29: #{gpr_sparse_forward.3} parent=27 // pred_check
              _
            $region30: #{gpr_sparse_forward.3} parent=27 // pred_check_branch
              %186 = sbr.rel target = $region32
            $region31: #{gpr_sparse_forward.3} parent=27 // pred_region
              // Predicated region
              $region44: #{gpr_sparse_forward.3} parent=31 // pred_check
                _
              $region45: #{gpr_sparse_forward.3} parent=31 // pred_check_branch
                %231 = sbr.rel (0) target = $region47
              $region46: #{gpr_sparse_forward.3} parent=31 // pred_region
                loop: start=0, step=1, limit=1
                $region48: #{gpr_sparse_forward.3} parent=46 // loop_pre_header
                  _
                $region49: #{gpr_sparse_forward.3} parent=46 // loop_header
                  %s233 = sphi 0, %s237
                  %p234 = scmp.ge.s32.totalorder %s233, 1
                  %s238 = sphi %s182, %s182
                  %s239 = sphi %s174, %s174
                $region50: #{gpr_sparse_forward.3} parent=46 // loop_header_branch
                  %236 = sbr.rel (%p234) target = $region54
                $region51: #{gpr_sparse_forward.3} parent=46 // loop_body
                  _
                $region52: #{gpr_sparse_forward.3} parent=46 // loop_footer
                  %s237 = sadd.s32 1, %s233
                $region53: #{gpr_sparse_forward.3} parent=46 // loop_footer_branch
                  %232 = sbr.rel target = $region49
                $region54: #{gpr_sparse_forward.3} parent=46 // loop_exit
                  _
                loop: start=0, step=1, limit=1
                $region55: #{gpr_sparse_forward.3} parent=46 // loop_pre_header
                  _
                $region56: #{gpr_sparse_forward.3} parent=46 // loop_header
                  %s242 = sphi 0, %s246
                  %p243 = scmp.ge.s32.totalorder %s242, 1
                  %s247 = sphi %s182, %s182
                  %s248 = sphi %s174, %s174
                $region57: #{gpr_sparse_forward.3} parent=46 // loop_header_branch
                  %245 = sbr.rel (%p243) target = $region61
                $region58: #{gpr_sparse_forward.3} parent=46 // loop_body
                  %v249 = vld [vmem:[%s247] sm:$0xf]
                  %250 = vst [vmem:[%s248] sm:$0xf] %v249
                  %v251 = vld [vmem:[%s247 + $0x10] sm:$0xf]
                  %252 = vst [vmem:[%s248 + $0x4] sm:$0xf] %v251
                  %v253 = vld [vmem:[%s247 + $0x20] sm:$0xf]
                  %254 = vst [vmem:[%s248 + $0x8] sm:$0xf] %v253
                  %v255 = vld [vmem:[%s247 + $0x30] sm:$0xf]
                  %256 = vst [vmem:[%s248 + $0xc] sm:$0xf] %v255
                  %v257 = vld [vmem:[%s247 + $0x40] sm:$0xf]
                  %258 = vst [vmem:[%s248 + $0x10] sm:$0xf] %v257
                  %v259 = vld [vmem:[%s247 + $0x50] sm:$0xf]
                  %260 = vst [vmem:[%s248 + $0x14] sm:$0xf] %v259
                  %v261 = vld [vmem:[%s247 + $0x60] sm:$0xf]
                  %262 = vst [vmem:[%s248 + $0x18] sm:$0xf] %v261
                  %v263 = vld [vmem:[%s247 + $0x70] sm:$0xf]
                  %264 = vst [vmem:[%s248 + $0x1c] sm:$0xf] %v263
                  %v265 = vld [vmem:[%s247 + $0x80] sm:$0xf]
                  %266 = vst [vmem:[%s248 + $0x20] sm:$0xf] %v265
                  %v267 = vld [vmem:[%s247 + $0x90] sm:$0xf]
                  %268 = vst [vmem:[%s248 + $0x24] sm:$0xf] %v267
                  %v269 = vld [vmem:[%s247 + $0xa0] sm:$0xf]
                  %270 = vst [vmem:[%s248 + $0x28] sm:$0xf] %v269
                  %v271 = vld [vmem:[%s247 + $0xb0] sm:$0xf]
                  %272 = vst [vmem:[%s248 + $0x2c] sm:$0xf] %v271
                  %v273 = vld [vmem:[%s247 + $0xc0] sm:$0xf]
                  %274 = vst [vmem:[%s248 + $0x30] sm:$0xf] %v273
                  %v275 = vld [vmem:[%s247 + $0xd0] sm:$0xf]
                  %276 = vst [vmem:[%s248 + $0x34] sm:$0xf] %v275
                  %v277 = vld [vmem:[%s247 + $0xe0] sm:$0xf]
                  %278 = vst [vmem:[%s248 + $0x38] sm:$0xf] %v277
                  %v279 = vld [vmem:[%s247 + $0xf0] sm:$0xf]
                  %280 = vst [vmem:[%s248 + $0x3c] sm:$0xf] %v279
                $region59: #{gpr_sparse_forward.3} parent=46 // loop_footer
                  %s246 = sadd.s32 1, %s242
                $region60: #{gpr_sparse_forward.3} parent=46 // loop_footer_branch
                  %241 = sbr.rel target = $region56
                $region61: #{gpr_sparse_forward.3} parent=46 // loop_exit
                  _
              $region47: #{gpr_sparse_forward.3} parent=31 // pred_fallthru
                _
            $region32: #{gpr_sparse_forward.3} parent=27 // pred_fallthru
              _
            // Predicated region
            $region33: #{gpr_sparse_forward.3} parent=27 // pred_check
              _
            $region34: #{gpr_sparse_forward.3} parent=27 // pred_check_branch
              %188 = sbr.rel (0) target = $region36
            $region35: #{gpr_sparse_forward.3} parent=27 // pred_region
              loop: start=0, step=1, limit=1
              $region37: #{gpr_sparse_forward.3} parent=35 // loop_pre_header
                _
              $region38: #{gpr_sparse_forward.3} parent=35 // loop_header
                %s191 = sphi 0, %s195
                %p192 = scmp.ge.s32.totalorder %s191, 1
                %s196 = sphi %s182, %s182
                %s197 = sphi %s174, %s174
              $region39: #{gpr_sparse_forward.3} parent=35 // loop_header_branch
                %194 = sbr.rel (%p192) target = $region43
              $region40: #{gpr_sparse_forward.3} parent=35 // loop_body
                %v198 = vld [vmem:[%s196] sm:$0xf]
                %199 = vst [vmem:[%s197] sm:$0xf] %v198
                %v200 = vld [vmem:[%s196 + $0x10] sm:$0xf]
                %201 = vst [vmem:[%s197 + $0x4] sm:$0xf] %v200
                %v202 = vld [vmem:[%s196 + $0x20] sm:$0xf]
                %203 = vst [vmem:[%s197 + $0x8] sm:$0xf] %v202
                %v204 = vld [vmem:[%s196 + $0x30] sm:$0xf]
                %205 = vst [vmem:[%s197 + $0xc] sm:$0xf] %v204
                %v206 = vld [vmem:[%s196 + $0x40] sm:$0xf]
                %207 = vst [vmem:[%s197 + $0x10] sm:$0xf] %v206
                %v208 = vld [vmem:[%s196 + $0x50] sm:$0xf]
                %209 = vst [vmem:[%s197 + $0x14] sm:$0xf] %v208
                %v210 = vld [vmem:[%s196 + $0x60] sm:$0xf]
                %211 = vst [vmem:[%s197 + $0x18] sm:$0xf] %v210
                %v212 = vld [vmem:[%s196 + $0x70] sm:$0xf]
                %213 = vst [vmem:[%s197 + $0x1c] sm:$0xf] %v212
                %v214 = vld [vmem:[%s196 + $0x80] sm:$0xf]
                %215 = vst [vmem:[%s197 + $0x20] sm:$0xf] %v214
                %v216 = vld [vmem:[%s196 + $0x90] sm:$0xf]
                %217 = vst [vmem:[%s197 + $0x24] sm:$0xf] %v216
                %v218 = vld [vmem:[%s196 + $0xa0] sm:$0xf]
                %219 = vst [vmem:[%s197 + $0x28] sm:$0xf] %v218
                %v220 = vld [vmem:[%s196 + $0xb0] sm:$0xf]
                %221 = vst [vmem:[%s197 + $0x2c] sm:$0xf] %v220
                %v222 = vld [vmem:[%s196 + $0xc0] sm:$0xf]
                %223 = vst [vmem:[%s197 + $0x30] sm:$0xf] %v222
                %v224 = vld [vmem:[%s196 + $0xd0] sm:$0xf]
                %225 = vst [vmem:[%s197 + $0x34] sm:$0xf] %v224
                %v226 = vld [vmem:[%s196 + $0xe0] sm:$0xf]
                %227 = vst [vmem:[%s197 + $0x38] sm:$0xf] %v226
                %v228 = vld [vmem:[%s196 + $0xf0] sm:$0xf]
                %229 = vst [vmem:[%s197 + $0x3c] sm:$0xf] %v228
              $region41: #{gpr_sparse_forward.3} parent=35 // loop_footer
                %s195 = sadd.s32 1, %s191
              $region42: #{gpr_sparse_forward.3} parent=35 // loop_footer_branch
                %190 = sbr.rel target = $region38
              $region43: #{gpr_sparse_forward.3} parent=35 // loop_exit
                _
            $region36: #{gpr_sparse_forward.3} parent=27 // pred_fallthru
              _
          $region28: #{gpr_sparse_forward.3} parent=23 // pred_fallthru
            _
          %281 = vnop
        $region24: #{gpr_sparse_forward.3} parent=19 // pred_fallthru
          _
        // Predicated region
        $region62: #{gpr_sparse_forward.3} parent=19 // pred_check
          %p282 = pneg %p93
        $region63: #{gpr_sparse_forward.3} parent=19 // pred_check_branch
          %284 = sbr.rel (%p282) target = $region65
        $region64: #{gpr_sparse_forward.3} parent=19 // pred_region
          %s285 = smul.u32 %s28, 3
          %s286 = sadd.s32 %s285, %s29
          %s287 = sld [smem:[#allocation4 + %s286]]
          %s288 = smul.u32 16, %s287
          %p289 = scmp.lt.s32.totalorder %s288, 63
          %s290 = scalar_select %p289, %s288, 63
          %s291 = smul.addr %s290, 4
          %s292 = scalar_lea.vmem %s3, %s291
          %s293 = smul.u32 %s28, 3
          %s294 = sadd.s32 %s293, %s29
          %s295 = sld [smem:[#allocation4 + %s294]]
          %s296 = smul.u32 16, %s295
        $region65: #{gpr_sparse_forward.3} parent=19 // pred_fallthru
          _
      $region20: #{gpr_sparse_forward.3} parent=5 // pred_fallthru
        _
      %p297 = scmp.le.s32.totalorder 1, %s21
      %p298 = scmp.lt.s32.totalorder %s21, 13
      %p299 = pnand %p297, %p298
      %p300 = pneg %p299
      // Predicated region
      $region66: #{gpr_sparse_forward.3} parent=5 // pred_check
        _
      $region67: #{gpr_sparse_forward.3} parent=5 // pred_check_branch
        %302 = sbr.rel (%p299) target = $region69
      $region68: #{gpr_sparse_forward.3} parent=5 // pred_region
        %s303 = ssub.s32 %s21, 1
        %s304 = sand.u32 %s54, 1
        %s305 = sand.u32 %s54, 1
        %s306 = smul.addr %s305, 64
        %s307 = scalar_lea.vmem [#allocation6], %s306
        // Predicated region
        $region70: #{gpr_sparse_forward.3} parent=68 // pred_check
          %p308 = pneg %p67
        $region71: #{gpr_sparse_forward.3} parent=68 // pred_check_branch
          %310 = sbr.rel (%p308) target = $region73
        $region72: #{gpr_sparse_forward.3} parent=68 // pred_region
          _
        $region73: #{gpr_sparse_forward.3} parent=68 // pred_fallthru
          _
        %s311 = sand.u32 %s54, 1
        %s312 = sand.u32 %s54, 1
        %s313 = smul.addr %s312, 64
        %s314 = scalar_lea.vmem [#allocation6], %s313
        %p315 = pneg %p67
        %p316 = pneg %p64
        %s317 = smul.u32 %s30, 3
        %s318 = sadd.s32 %s317, %s31
        %s319 = sld [smem:[#allocation4 + %s318]]
        %s320 = smul.u32 16, %s319
        %p321 = scmp.lt.s32.totalorder %s320, 63
        %s322 = scalar_select %p321, %s320, 63
        %s323 = smul.addr %s322, 4
        %s324 = scalar_lea.vmem %s3, %s323
        %p325 = pneg %p99
        %p326 = pneg %p96
        %p327 = pneg %p120
        %p328 = pneg %p117
        %p329 = pneg %p146
        %p330 = pneg %p143
        %s331 = smul.u32 16, %s30
        %p332 = scmp.lt.s32.totalorder %s331, 63
        %s333 = scalar_select %p332, %s331, 63
        %s334 = smul.addr %s333, 8
        %s335 = scalar_lea.vmem %s5, %s334
        %s336 = smul.u32 %s30, 3
        %s337 = sadd.s32 %s336, %s31
        %s338 = sld [smem:[#allocation4 + %s337]]
        %s339 = smul.u32 16, %s30
        %s340 = smul.u32 %s30, 3
        %s341 = sadd.s32 %s340, %s31
        %s342 = sld [smem:[#allocation4 + %s341]]
        %s343 = smul.u32 16, %s342
        %p344 = scmp.lt.s32.totalorder %s343, 63
        %s345 = scalar_select %p344, %s343, 63
        %s346 = smul.addr %s345, 4
        %s347 = scalar_lea.vmem %s3, %s346
        %s348 = smul.u32 %s30, 3
        %s349 = sadd.s32 %s348, %s31
        %s350 = sld [smem:[#allocation4 + %s349]]
        %s351 = smul.u32 16, %s350
        %s352 = smul.u32 16, %s30
        %p353 = scmp.lt.s32.totalorder %s352, 63
        %s354 = scalar_select %p353, %s352, 63
        %s355 = smul.addr %s354, 8
        %s356 = scalar_lea.vmem %s5, %s355
        %s357 = smul.u32 16, %s30
        %p359 = scmp.eq.s32.totalorder %s31, 0
        // Predicated region
        $region74: #{gpr_sparse_forward.3} parent=68 // pred_check
          %p360 = pneg %p359
        $region75: #{gpr_sparse_forward.3} parent=68 // pred_check_branch
          %362 = sbr.rel (%p360) target = $region77
        $region76: #{gpr_sparse_forward.3} parent=68 // pred_region
          %vm363 = vcmask 261120
          %364 = vst.msk [vmem:[#allocation2] sm:$0xff] %vm363, 0.0
          %365 = vst.msk [vmem:[#allocation2 + $0x8] sm:$0xff] %vm363, 0.0
          %366 = vst.msk [vmem:[#allocation2 + $0x10] sm:$0xff] %vm363, 0.0
          %367 = vst.msk [vmem:[#allocation2 + $0x18] sm:$0xff] %vm363, 0.0
          %368 = vst.msk [vmem:[#allocation2 + $0x20] sm:$0xff] %vm363, 0.0
          %369 = vst.msk [vmem:[#allocation2 + $0x28] sm:$0xff] %vm363, 0.0
          %370 = vst.msk [vmem:[#allocation2 + $0x30] sm:$0xff] %vm363, 0.0
          %371 = vst.msk [vmem:[#allocation2 + $0x38] sm:$0xff] %vm363, 0.0
          %372 = vst.msk [vmem:[#allocation2 + $0x40] sm:$0xff] %vm363, 0.0
          %373 = vst.msk [vmem:[#allocation2 + $0x48] sm:$0xff] %vm363, 0.0
          %374 = vst.msk [vmem:[#allocation2 + $0x50] sm:$0xff] %vm363, 0.0
          %375 = vst.msk [vmem:[#allocation2 + $0x58] sm:$0xff] %vm363, 0.0
          %376 = vst.msk [vmem:[#allocation2 + $0x60] sm:$0xff] %vm363, 0.0
          %377 = vst.msk [vmem:[#allocation2 + $0x68] sm:$0xff] %vm363, 0.0
          %378 = vst.msk [vmem:[#allocation2 + $0x70] sm:$0xff] %vm363, 0.0
          %379 = vst.msk [vmem:[#allocation2 + $0x78] sm:$0xff] %vm363, 0.0
        $region77: #{gpr_sparse_forward.3} parent=68 // pred_fallthru
          _
        %s380 = sld [smem:[#allocation5 + %s30]]
        %p381 = scmp.lt.s32.totalorder %s31, %s380
        // Predicated region
        $region78: #{gpr_sparse_forward.3} parent=68 // pred_check
          %p382 = pneg %p381
        $region79: #{gpr_sparse_forward.3} parent=68 // pred_check_branch
          %384 = sbr.rel (%p382) target = $region81
        $region80: #{gpr_sparse_forward.3} parent=68 // pred_region
          %v385 = vld [vmem:[#allocation2] sm:$0xff]
          %v386 = vld [vmem:[#allocation2 + $0x8] sm:$0xff]
          %v387 = vld [vmem:[#allocation2 + $0x10] sm:$0xff]
          %v388 = vld [vmem:[#allocation2 + $0x18] sm:$0xff]
          %v389 = vld [vmem:[#allocation2 + $0x20] sm:$0xff]
          %v390 = vld [vmem:[#allocation2 + $0x28] sm:$0xff]
          %v391 = vld [vmem:[#allocation2 + $0x30] sm:$0xff]
          %v392 = vld [vmem:[#allocation2 + $0x38] sm:$0xff]
          %v393 = vld [vmem:[#allocation2 + $0x40] sm:$0xff]
          %v394 = vld [vmem:[#allocation2 + $0x48] sm:$0xff]
          %v395 = vld [vmem:[#allocation2 + $0x50] sm:$0xff]
          %v396 = vld [vmem:[#allocation2 + $0x58] sm:$0xff]
          %v397 = vld [vmem:[#allocation2 + $0x60] sm:$0xff]
          %v398 = vld [vmem:[#allocation2 + $0x68] sm:$0xff]
          %v399 = vld [vmem:[#allocation2 + $0x70] sm:$0xff]
          %v400 = vld [vmem:[#allocation2 + $0x78] sm:$0xff]
          %v401 = vld [vmem:[%s307] sm:$0xf]
          %v402 = vld [vmem:[%s307 + $0x4] sm:$0xf]
          %v403 = vld [vmem:[%s307 + $0x8] sm:$0xf]
          %v404 = vld [vmem:[%s307 + $0xc] sm:$0xf]
          %v405 = vld [vmem:[%s307 + $0x10] sm:$0xf]
          %v406 = vld [vmem:[%s307 + $0x14] sm:$0xf]
          %v407 = vld [vmem:[%s307 + $0x18] sm:$0xf]
          %v408 = vld [vmem:[%s307 + $0x1c] sm:$0xf]
          %v409 = vld [vmem:[%s307 + $0x20] sm:$0xf]
          %v410 = vld [vmem:[%s307 + $0x24] sm:$0xf]
          %v411 = vld [vmem:[%s307 + $0x28] sm:$0xf]
          %v412 = vld [vmem:[%s307 + $0x2c] sm:$0xf]
          %v413 = vld [vmem:[%s307 + $0x30] sm:$0xf]
          %v414 = vld [vmem:[%s307 + $0x34] sm:$0xf]
          %v415 = vld [vmem:[%s307 + $0x38] sm:$0xf]
          %v416 = vld [vmem:[%s307 + $0x3c] sm:$0xf]
          %v417 = vld [vmem:[%s347] sm:$0xf]
          %v418 = vld [vmem:[%s347 + $0x4] sm:$0xf]
          %v419 = vld [vmem:[%s347 + $0x8] sm:$0xf]
          %v420 = vld [vmem:[%s347 + $0xc] sm:$0xf]
          %v421 = vld [vmem:[%s347 + $0x10] sm:$0xf]
          %v422 = vld [vmem:[%s347 + $0x14] sm:$0xf]
          %v423 = vld [vmem:[%s347 + $0x18] sm:$0xf]
          %v424 = vld [vmem:[%s347 + $0x1c] sm:$0xf]
          %v425 = vld [vmem:[%s347 + $0x20] sm:$0xf]
          %v426 = vld [vmem:[%s347 + $0x24] sm:$0xf]
          %v427 = vld [vmem:[%s347 + $0x28] sm:$0xf]
          %v428 = vld [vmem:[%s347 + $0x2c] sm:$0xf]
          %v429 = vld [vmem:[%s347 + $0x30] sm:$0xf]
          %v430 = vld [vmem:[%s347 + $0x34] sm:$0xf]
          %v431 = vld [vmem:[%s347 + $0x38] sm:$0xf]
          %v432 = vld [vmem:[%s347 + $0x3c] sm:$0xf]
          %v449 = vunpack.c.l.b16 %v401
          %v450 = vunpack.c.l.b16 %v402
          %v451 = vunpack.c.l.b16 %v403
          %v452 = vunpack.c.l.b16 %v404
          %v453 = vunpack.c.l.b16 %v405
          %v454 = vunpack.c.l.b16 %v406
          %v455 = vunpack.c.l.b16 %v407
          %v456 = vunpack.c.l.b16 %v408
          %v457 = vunpack.c.l.b16 %v409
          %v458 = vunpack.c.l.b16 %v410
          %v459 = vunpack.c.l.b16 %v411
          %v460 = vunpack.c.l.b16 %v412
          %v461 = vunpack.c.l.b16 %v413
          %v462 = vunpack.c.l.b16 %v414
          %v463 = vunpack.c.l.b16 %v415
          %v464 = vunpack.c.l.b16 %v416
          %v465 = vpack.c.b16 %v450, %v449
          %v466 = vpack.c.b16 %v452, %v451
          %v467 = vpack.c.b16 %v454, %v453
          %v468 = vpack.c.b16 %v456, %v455
          %v469 = vpack.c.b16 %v458, %v457
          %v470 = vpack.c.b16 %v460, %v459
          %v471 = vpack.c.b16 %v462, %v461
          %v472 = vpack.c.b16 %v464, %v463
          %v497 = vunpack.c.l.b16 %v417
          %v498 = vunpack.c.l.b16 %v418
          %v499 = vunpack.c.l.b16 %v419
          %v500 = vunpack.c.l.b16 %v420
          %v501 = vunpack.c.l.b16 %v421
          %v502 = vunpack.c.l.b16 %v422
          %v503 = vunpack.c.l.b16 %v423
          %v504 = vunpack.c.l.b16 %v424
          %v505 = vunpack.c.l.b16 %v425
          %v506 = vunpack.c.l.b16 %v426
          %v507 = vunpack.c.l.b16 %v427
          %v508 = vunpack.c.l.b16 %v428
          %v509 = vunpack.c.l.b16 %v429
          %v510 = vunpack.c.l.b16 %v430
          %v511 = vunpack.c.l.b16 %v431
          %v512 = vunpack.c.l.b16 %v432
          %v513 = vpack.c.b16 %v498, %v497
          %v514 = vpack.c.b16 %v500, %v499
          %v515 = vpack.c.b16 %v502, %v501
          %v516 = vpack.c.b16 %v504, %v503
          %v517 = vpack.c.b16 %v506, %v505
          %v518 = vpack.c.b16 %v508, %v507
          %v519 = vpack.c.b16 %v510, %v509
          %v520 = vpack.c.b16 %v512, %v511
          %529 = vmatprep.subr.bf16.mxu0 0
          %530 = vmatpush1.bf16.msra.mxu0 %v513
          %531 = vmatprep.subr.bf16.mxu0 0
          %532 = vmatpush1.bf16.msra.mxu0 %v514
          %533 = vmatprep.subr.bf16.mxu0 0
          %534 = vmatpush1.bf16.msra.mxu0 %v515
          %535 = vmatprep.subr.bf16.mxu0 0
          %536 = vmatpush1.bf16.msra.mxu0 %v516
          %537 = vmatprep.subr.bf16.mxu0 0
          %538 = vmatpush1.bf16.msra.mxu0 %v517
          %539 = vmatprep.subr.bf16.mxu0 0
          %540 = vmatpush1.bf16.msra.mxu0 %v518
          %541 = vmatprep.subr.bf16.mxu0 0
          %542 = vmatpush1.bf16.msra.mxu0 %v519
          %543 = vmatprep.subr.bf16.mxu0 0
          %544 = vmatpush1.bf16.msra.mxu0 %v520
          %545 = vmatprep.subr.bf16.mxu0 0
          %546 = vmatpush1.bf16.msra.mxu0 0
          %547 = vmatprep.subr.bf16.mxu0 0
          %548 = vmatpush1.bf16.msra.mxu0 0
          %549 = vmatprep.subr.bf16.mxu0 0
          %550 = vmatpush1.bf16.msra.mxu0 0
          %551 = vmatprep.subr.bf16.mxu0 0
          %552 = vmatpush1.bf16.msra.mxu0 0
          %553 = vmatprep.subr.bf16.mxu0 0
          %554 = vmatpush1.bf16.msra.mxu0 0
          %555 = vmatprep.subr.bf16.mxu0 0
          %556 = vmatpush1.bf16.msra.mxu0 0
          %557 = vmatprep.subr.bf16.mxu0 0
          %558 = vmatpush1.bf16.msra.mxu0 0
          %559 = vmatprep.subr.bf16.mxu0 0
          %560 = vmatpush1.bf16.msra.mxu0 0
          %561 = vmatprep.mubr.bf16.mxu0 0
          %562 = vmatmul.mubr.bf16.gmra.mrb[0].mxu0 %v465
          %v563 = vpop.f32.mrb[0].mxu0
          %v564 = vadd.f32 0.0, %v563
          %v565 = vpop.f32.mrb[0].mxu0
          %v566 = vpop.f32.mrb[0].mxu0
          %v567 = vadd.f32 0.0, %v566
          %v568 = vpop.f32.mrb[0].mxu0
          %569 = vmatprep.mubr.bf16.mxu0 0
          %570 = vmatmul.mubr.bf16.gmra.mrb[0].mxu0 %v466
          %v571 = vpop.f32.mrb[0].mxu0
          %v572 = vadd.f32 0.0, %v571
          %v573 = vpop.f32.mrb[0].mxu0
          %v574 = vpop.f32.mrb[0].mxu0
          %v575 = vadd.f32 0.0, %v574
          %v576 = vpop.f32.mrb[0].mxu0
          %577 = vmatprep.mubr.bf16.mxu0 0
          %578 = vmatmul.mubr.bf16.gmra.mrb[0].mxu0 %v467
          %v579 = vpop.f32.mrb[0].mxu0
          %v580 = vadd.f32 0.0, %v579
          %v581 = vpop.f32.mrb[0].mxu0
          %v582 = vpop.f32.mrb[0].mxu0
          %v583 = vadd.f32 0.0, %v582
          %v584 = vpop.f32.mrb[0].mxu0
          %585 = vmatprep.mubr.bf16.mxu0 0
          %586 = vmatmul.mubr.bf16.gmra.mrb[0].mxu0 %v468
          %v587 = vpop.f32.mrb[0].mxu0
          %v588 = vadd.f32 0.0, %v587
          %v589 = vpop.f32.mrb[0].mxu0
          %v590 = vpop.f32.mrb[0].mxu0
          %v591 = vadd.f32 0.0, %v590
          %v592 = vpop.f32.mrb[0].mxu0
          %593 = vmatprep.mubr.bf16.mxu0 0
          %594 = vmatmul.mubr.bf16.gmra.mrb[0].mxu0 %v469
          %v595 = vpop.f32.mrb[0].mxu0
          %v596 = vadd.f32 0.0, %v595
          %v597 = vpop.f32.mrb[0].mxu0
          %v598 = vpop.f32.mrb[0].mxu0
          %v599 = vadd.f32 0.0, %v598
          %v600 = vpop.f32.mrb[0].mxu0
          %601 = vmatprep.mubr.bf16.mxu0 0
          %602 = vmatmul.mubr.bf16.gmra.mrb[0].mxu0 %v470
          %v603 = vpop.f32.mrb[0].mxu0
          %v604 = vadd.f32 0.0, %v603
          %v605 = vpop.f32.mrb[0].mxu0
          %v606 = vpop.f32.mrb[0].mxu0
          %v607 = vadd.f32 0.0, %v606
          %v608 = vpop.f32.mrb[0].mxu0
          %609 = vmatprep.mubr.bf16.mxu0 0
          %610 = vmatmul.mubr.bf16.gmra.mrb[0].mxu0 %v471
          %v611 = vpop.f32.mrb[0].mxu0
          %v612 = vadd.f32 0.0, %v611
          %v613 = vpop.f32.mrb[0].mxu0
          %v614 = vpop.f32.mrb[0].mxu0
          %v615 = vadd.f32 0.0, %v614
          %v616 = vpop.f32.mrb[0].mxu0
          %617 = vmatprep.mubr.bf16.mxu0 0
          %618 = vmatmul.mubr.bf16.gmra.mrb[0].mxu0 %v472
          %v619 = vpop.f32.mrb[0].mxu0
          %v620 = vadd.f32 0.0, %v619
          %v621 = vpop.f32.mrb[0].mxu0
          %v622 = vpop.f32.mrb[0].mxu0
          %v623 = vadd.f32 0.0, %v622
          %v624 = vpop.f32.mrb[0].mxu0
          %625 = vdwg.mxu0
          %v626 = vadd.f32 %v385, %v564
          %v627 = vadd.f32 %v386, %v567
          %v628 = vadd.f32 %v387, %v572
          %v629 = vadd.f32 %v388, %v575
          %v630 = vadd.f32 %v389, %v580
          %v631 = vadd.f32 %v390, %v583
          %v632 = vadd.f32 %v391, %v588
          %v633 = vadd.f32 %v392, %v591
          %v634 = vadd.f32 %v393, %v596
          %v635 = vadd.f32 %v394, %v599
          %v636 = vadd.f32 %v395, %v604
          %v637 = vadd.f32 %v396, %v607
          %v638 = vadd.f32 %v397, %v612
          %v639 = vadd.f32 %v398, %v615
          %v640 = vadd.f32 %v399, %v620
          %v641 = vadd.f32 %v400, %v623
          %vm642 = vcmask 261120
          %643 = vst.msk [vmem:[#allocation2] sm:$0xff] %vm642, %v626
          %644 = vst.msk [vmem:[#allocation2 + $0x8] sm:$0xff] %vm642, %v627
          %645 = vst.msk [vmem:[#allocation2 + $0x10] sm:$0xff] %vm642, %v628
          %646 = vst.msk [vmem:[#allocation2 + $0x18] sm:$0xff] %vm642, %v629
          %647 = vst.msk [vmem:[#allocation2 + $0x20] sm:$0xff] %vm642, %v630
          %648 = vst.msk [vmem:[#allocation2 + $0x28] sm:$0xff] %vm642, %v631
          %649 = vst.msk [vmem:[#allocation2 + $0x30] sm:$0xff] %vm642, %v632
          %650 = vst.msk [vmem:[#allocation2 + $0x38] sm:$0xff] %vm642, %v633
          %651 = vst.msk [vmem:[#allocation2 + $0x40] sm:$0xff] %vm642, %v634
          %652 = vst.msk [vmem:[#allocation2 + $0x48] sm:$0xff] %vm642, %v635
          %653 = vst.msk [vmem:[#allocation2 + $0x50] sm:$0xff] %vm642, %v636
          %654 = vst.msk [vmem:[#allocation2 + $0x58] sm:$0xff] %vm642, %v637
          %655 = vst.msk [vmem:[#allocation2 + $0x60] sm:$0xff] %vm642, %v638
          %656 = vst.msk [vmem:[#allocation2 + $0x68] sm:$0xff] %vm642, %v639
          %657 = vst.msk [vmem:[#allocation2 + $0x70] sm:$0xff] %vm642, %v640
          %658 = vst.msk [vmem:[#allocation2 + $0x78] sm:$0xff] %vm642, %v641
        $region81: #{gpr_sparse_forward.3} parent=68 // pred_fallthru
          _
        %p659 = scmp.eq.s32.totalorder %s31, 2
        // Predicated region
        $region82: #{gpr_sparse_forward.3} parent=68 // pred_check
          %p660 = pneg %p659
        $region83: #{gpr_sparse_forward.3} parent=68 // pred_check_branch
          %662 = sbr.rel (%p660) target = $region85
        $region84: #{gpr_sparse_forward.3} parent=68 // pred_region
          %v663 = vld [vmem:[#allocation2] sm:$0xff]
          %v664 = vld [vmem:[#allocation2 + $0x8] sm:$0xff]
          %v665 = vld [vmem:[#allocation2 + $0x10] sm:$0xff]
          %v666 = vld [vmem:[#allocation2 + $0x18] sm:$0xff]
          %v667 = vld [vmem:[#allocation2 + $0x20] sm:$0xff]
          %v668 = vld [vmem:[#allocation2 + $0x28] sm:$0xff]
          %v669 = vld [vmem:[#allocation2 + $0x30] sm:$0xff]
          %v670 = vld [vmem:[#allocation2 + $0x38] sm:$0xff]
          %v671 = vld [vmem:[#allocation2 + $0x40] sm:$0xff]
          %v672 = vld [vmem:[#allocation2 + $0x48] sm:$0xff]
          %v673 = vld [vmem:[#allocation2 + $0x50] sm:$0xff]
          %v674 = vld [vmem:[#allocation2 + $0x58] sm:$0xff]
          %v675 = vld [vmem:[#allocation2 + $0x60] sm:$0xff]
          %v676 = vld [vmem:[#allocation2 + $0x68] sm:$0xff]
          %v677 = vld [vmem:[#allocation2 + $0x70] sm:$0xff]
          %v678 = vld [vmem:[#allocation2 + $0x78] sm:$0xff]
          %v679 = vmax.f32 %v663, 0.0
          %v680 = vmax.f32 %v664, 0.0
          %v681 = vmax.f32 %v665, 0.0
          %v682 = vmax.f32 %v666, 0.0
          %v683 = vmax.f32 %v667, 0.0
          %v684 = vmax.f32 %v668, 0.0
          %v685 = vmax.f32 %v669, 0.0
          %v686 = vmax.f32 %v670, 0.0
          %v687 = vmax.f32 %v671, 0.0
          %v688 = vmax.f32 %v672, 0.0
          %v689 = vmax.f32 %v673, 0.0
          %v690 = vmax.f32 %v674, 0.0
          %v691 = vmax.f32 %v675, 0.0
          %v692 = vmax.f32 %v676, 0.0
          %v693 = vmax.f32 %v677, 0.0
          %v694 = vmax.f32 %v678, 0.0
          %v695 = vld [vmem:[%s4] sm:$0xff]
          %v696 = vld [vmem:[%s4 + $0x8] sm:$0xff]
          %v697 = vld [vmem:[%s4 + $0x10] sm:$0xff]
          %v698 = vld [vmem:[%s4 + $0x18] sm:$0xff]
          %vm699 = vcmask 261120
          %v701 = vsel %vm699, %v679, 0
          %v704 = vsel %vm699, %v680, 0
          %v707 = vsel %vm699, %v681, 0
          %v710 = vsel %vm699, %v682, 0
          %v713 = vsel %vm699, %v683, 0
          %v716 = vsel %vm699, %v684, 0
          %v719 = vsel %vm699, %v685, 0
          %v722 = vsel %vm699, %v686, 0
          %v725 = vsel %vm699, %v687, 0
          %v728 = vsel %vm699, %v688, 0
          %v731 = vsel %vm699, %v689, 0
          %v734 = vsel %vm699, %v690, 0
          %v737 = vsel %vm699, %v691, 0
          %v740 = vsel %vm699, %v692, 0
          %v743 = vsel %vm699, %v693, 0
          %v746 = vsel %vm699, %v694, 0
          %748 = vmatprep.subr.mxu0 0.0
          %749 = vmatpush1.msra.mxu0 %v695
          %750 = vmatprep.subr.mxu0 0.0
          %751 = vmatpush1.msra.mxu0 %v696
          %752 = vmatprep.subr.mxu0 0.0
          %753 = vmatpush1.msra.mxu0 %v697
          %754 = vmatprep.subr.mxu0 0.0
          %755 = vmatpush1.msra.mxu0 %v698
          %756 = vmatprep.subr.mxu0 0.0
          %757 = vmatpush1.msra.mxu0 0.0
          %758 = vmatprep.subr.mxu0 0.0
          %759 = vmatpush1.msra.mxu0 0.0
          %760 = vmatprep.subr.mxu0 0.0
          %761 = vmatpush1.msra.mxu0 0.0
          %762 = vmatprep.subr.mxu0 0.0
          %763 = vmatpush1.msra.mxu0 0.0
          %764 = vmatprep.subr.mxu0 0.0
          %765 = vmatpush1.msra.mxu0 0.0
          %766 = vmatprep.subr.mxu0 0.0
          %767 = vmatpush1.msra.mxu0 0.0
          %768 = vmatprep.subr.mxu0 0.0
          %769 = vmatpush1.msra.mxu0 0.0
          %770 = vmatprep.subr.mxu0 0.0
          %771 = vmatpush1.msra.mxu0 0.0
          %772 = vmatprep.subr.mxu0 0.0
          %773 = vmatpush1.msra.mxu0 0.0
          %774 = vmatprep.subr.mxu0 0.0
          %775 = vmatpush1.msra.mxu0 0.0
          %776 = vmatprep.subr.mxu0 0.0
          %777 = vmatpush1.msra.mxu0 0.0
          %778 = vmatprep.subr.mxu0 0.0
          %779 = vmatpush1.msra.mxu0 0.0
          %780 = vmatprep.subr.mxu0 0.0
          %781 = vmatpush1.msra.mxu0 0.0
          %782 = vmatprep.subr.mxu0 0.0
          %783 = vmatpush1.msra.mxu0 0.0
          %784 = vmatprep.subr.mxu0 0.0
          %785 = vmatpush1.msra.mxu0 0.0
          %786 = vmatprep.subr.mxu0 0.0
          %787 = vmatpush1.msra.mxu0 0.0
          %788 = vmatprep.subr.mxu0 0.0
          %789 = vmatpush1.msra.mxu0 0.0
          %790 = vmatprep.subr.mxu0 0.0
          %791 = vmatpush1.msra.mxu0 0.0
          %792 = vmatprep.subr.mxu0 0.0
          %793 = vmatpush1.msra.mxu0 0.0
          %794 = vmatprep.subr.mxu0 0.0
          %795 = vmatpush1.msra.mxu0 0.0
          %796 = vmatprep.subr.mxu0 0.0
          %797 = vmatpush1.msra.mxu0 0.0
          %798 = vmatprep.subr.mxu0 0.0
          %799 = vmatpush1.msra.mxu0 0.0
          %800 = vmatprep.subr.mxu0 0.0
          %801 = vmatpush1.msra.mxu0 0.0
          %802 = vmatprep.subr.mxu0 0.0
          %803 = vmatpush1.msra.mxu0 0.0
          %804 = vmatprep.subr.mxu0 0.0
          %805 = vmatpush1.msra.mxu0 0.0
          %806 = vmatprep.subr.mxu0 0.0
          %807 = vmatpush1.msra.mxu0 0.0
          %808 = vmatprep.subr.mxu0 0.0
          %809 = vmatpush1.msra.mxu0 0.0
          %810 = vmatprep.subr.mxu0 0.0
          %811 = vmatpush1.msra.mxu0 0.0
          %812 = vmatprep.mubr.f32.mxu0 0.0
          %813 = vmatmul.mubr.f32.gmra.mrb[0].mxu0 %v701
          %v814 = vpop.f32.mrb[0].mxu0
          %v815 = vadd.f32 0.0, %v814
          %v816 = vpop.f32.mrb[0].mxu0
          %817 = vmatprep.mubr.f32.mxu0 0.0
          %818 = vmatmul.mubr.f32.gmra.mrb[0].mxu0 %v704
          %v819 = vpop.f32.mrb[0].mxu0
          %v820 = vadd.f32 0.0, %v819
          %v821 = vpop.f32.mrb[0].mxu0
          %822 = vmatprep.mubr.f32.mxu0 0.0
          %823 = vmatmul.mubr.f32.gmra.mrb[0].mxu0 %v707
          %v824 = vpop.f32.mrb[0].mxu0
          %v825 = vadd.f32 0.0, %v824
          %v826 = vpop.f32.mrb[0].mxu0
          %827 = vmatprep.mubr.f32.mxu0 0.0
          %828 = vmatmul.mubr.f32.gmra.mrb[0].mxu0 %v710
          %v829 = vpop.f32.mrb[0].mxu0
          %v830 = vadd.f32 0.0, %v829
          %v831 = vpop.f32.mrb[0].mxu0
          %832 = vmatprep.mubr.f32.mxu0 0.0
          %833 = vmatmul.mubr.f32.gmra.mrb[0].mxu0 %v713
          %v834 = vpop.f32.mrb[0].mxu0
          %v835 = vadd.f32 0.0, %v834
          %v836 = vpop.f32.mrb[0].mxu0
          %837 = vmatprep.mubr.f32.mxu0 0.0
          %838 = vmatmul.mubr.f32.gmra.mrb[0].mxu0 %v716
          %v839 = vpop.f32.mrb[0].mxu0
          %v840 = vadd.f32 0.0, %v839
          %v841 = vpop.f32.mrb[0].mxu0
          %842 = vmatprep.mubr.f32.mxu0 0.0
          %843 = vmatmul.mubr.f32.gmra.mrb[0].mxu0 %v719
          %v844 = vpop.f32.mrb[0].mxu0
          %v845 = vadd.f32 0.0, %v844
          %v846 = vpop.f32.mrb[0].mxu0
          %847 = vmatprep.mubr.f32.mxu0 0.0
          %848 = vmatmul.mubr.f32.gmra.mrb[0].mxu0 %v722
          %v849 = vpop.f32.mrb[0].mxu0
          %v850 = vadd.f32 0.0, %v849
          %v851 = vpop.f32.mrb[0].mxu0
          %852 = vmatprep.mubr.f32.mxu0 0.0
          %853 = vmatmul.mubr.f32.gmra.mrb[0].mxu0 %v725
          %v854 = vpop.f32.mrb[0].mxu0
          %v855 = vadd.f32 0.0, %v854
          %v856 = vpop.f32.mrb[0].mxu0
          %857 = vmatprep.mubr.f32.mxu0 0.0
          %858 = vmatmul.mubr.f32.gmra.mrb[0].mxu0 %v728
          %v859 = vpop.f32.mrb[0].mxu0
          %v860 = vadd.f32 0.0, %v859
          %v861 = vpop.f32.mrb[0].mxu0
          %862 = vmatprep.mubr.f32.mxu0 0.0
          %863 = vmatmul.mubr.f32.gmra.mrb[0].mxu0 %v731
          %v864 = vpop.f32.mrb[0].mxu0
          %v865 = vadd.f32 0.0, %v864
          %v866 = vpop.f32.mrb[0].mxu0
          %867 = vmatprep.mubr.f32.mxu0 0.0
          %868 = vmatmul.mubr.f32.gmra.mrb[0].mxu0 %v734
          %v869 = vpop.f32.mrb[0].mxu0
          %v870 = vadd.f32 0.0, %v869
          %v871 = vpop.f32.mrb[0].mxu0
          %872 = vmatprep.mubr.f32.mxu0 0.0
          %873 = vmatmul.mubr.f32.gmra.mrb[0].mxu0 %v737
          %v874 = vpop.f32.mrb[0].mxu0
          %v875 = vadd.f32 0.0, %v874
          %v876 = vpop.f32.mrb[0].mxu0
          %877 = vmatprep.mubr.f32.mxu0 0.0
          %878 = vmatmul.mubr.f32.gmra.mrb[0].mxu0 %v740
          %v879 = vpop.f32.mrb[0].mxu0
          %v880 = vadd.f32 0.0, %v879
          %v881 = vpop.f32.mrb[0].mxu0
          %882 = vmatprep.mubr.f32.mxu0 0.0
          %883 = vmatmul.mubr.f32.gmra.mrb[0].mxu0 %v743
          %v884 = vpop.f32.mrb[0].mxu0
          %v885 = vadd.f32 0.0, %v884
          %v886 = vpop.f32.mrb[0].mxu0
          %887 = vmatprep.mubr.f32.mxu0 0.0
          %888 = vmatmul.mubr.f32.gmra.mrb[0].mxu0 %v746
          %v889 = vpop.f32.mrb[0].mxu0
          %v890 = vadd.f32 0.0, %v889
          %v891 = vpop.f32.mrb[0].mxu0
          %892 = vdwg.mxu0
          %vm893 = vcmask 7168
          %894 = vst.msk [vmem:[%s356] sm:$0xff] %vm893, %v815
          %895 = vst.msk [vmem:[%s356 + $0x8] sm:$0xff] %vm893, %v820
          %896 = vst.msk [vmem:[%s356 + $0x10] sm:$0xff] %vm893, %v825
          %897 = vst.msk [vmem:[%s356 + $0x18] sm:$0xff] %vm893, %v830
          %898 = vst.msk [vmem:[%s356 + $0x20] sm:$0xff] %vm893, %v835
          %899 = vst.msk [vmem:[%s356 + $0x28] sm:$0xff] %vm893, %v840
          %900 = vst.msk [vmem:[%s356 + $0x30] sm:$0xff] %vm893, %v845
          %901 = vst.msk [vmem:[%s356 + $0x38] sm:$0xff] %vm893, %v850
          %902 = vst.msk [vmem:[%s356 + $0x40] sm:$0xff] %vm893, %v855
          %903 = vst.msk [vmem:[%s356 + $0x48] sm:$0xff] %vm893, %v860
          %904 = vst.msk [vmem:[%s356 + $0x50] sm:$0xff] %vm893, %v865
          %905 = vst.msk [vmem:[%s356 + $0x58] sm:$0xff] %vm893, %v870
          %906 = vst.msk [vmem:[%s356 + $0x60] sm:$0xff] %vm893, %v875
          %907 = vst.msk [vmem:[%s356 + $0x68] sm:$0xff] %vm893, %v880
          %908 = vst.msk [vmem:[%s356 + $0x70] sm:$0xff] %vm893, %v885
          %909 = vst.msk [vmem:[%s356 + $0x78] sm:$0xff] %vm893, %v890
        $region85: #{gpr_sparse_forward.3} parent=68 // pred_fallthru
          _
        %s910 = smul.u32 16, %s30
        %p911 = scmp.lt.s32.totalorder %s910, 63
        %s912 = scalar_select %p911, %s910, 63
        %s913 = smul.addr %s912, 8
        %s914 = scalar_lea.vmem %s5, %s913
        // Predicated region
        $region86: #{gpr_sparse_forward.3} parent=68 // pred_check
          %p915 = pneg %p143
        $region87: #{gpr_sparse_forward.3} parent=68 // pred_check_branch
          %917 = sbr.rel (%p915) target = $region89
        $region88: #{gpr_sparse_forward.3} parent=68 // pred_region
          %s918 = smul.u32 16, %s30
        $region89: #{gpr_sparse_forward.3} parent=68 // pred_fallthru
          _
      $region69: #{gpr_sparse_forward.3} parent=5 // pred_fallthru
        _
      %p919 = scmp.le.s32.totalorder 2, %s21
      // Predicated region
      $region90: #{gpr_sparse_forward.3} parent=5 // pred_check
        %p920 = pneg %p919
      $region91: #{gpr_sparse_forward.3} parent=5 // pred_check_branch
        %922 = sbr.rel (%p920) target = $region93
      $region92: #{gpr_sparse_forward.3} parent=5 // pred_region
        %s923 = ssub.s32 %s21, 2
        // Predicated region
        $region94: #{gpr_sparse_forward.3} parent=92 // pred_check
          %p924 = pneg %p149
        $region95: #{gpr_sparse_forward.3} parent=92 // pred_check_branch
          %926 = sbr.rel (%p924) target = $region97
        $region96: #{gpr_sparse_forward.3} parent=92 // pred_region
          %s927 = smul.u32 16, %s32
          %p928 = scmp.lt.s32.totalorder %s927, 63
          %s929 = scalar_select %p928, %s927, 63
          %s930 = smul.addr %s929, 8
          %s931 = scalar_lea.vmem %s5, %s930
        $region97: #{gpr_sparse_forward.3} parent=92 // pred_fallthru
          _
      $region93: #{gpr_sparse_forward.3} parent=5 // pred_fallthru
        _
    $region6: #{gpr_sparse_forward.3} parent=1 // loop_footer
      %s25 = sadd.s32 1, %s21
    $region7: #{gpr_sparse_forward.3} parent=1 // loop_footer_branch
      %20 = sbr.rel target = $region3
    $region8: #{gpr_sparse_forward.3} parent=1 // loop_exit
      _

// kernel: gpr_sparse_forward.2
$region0: #{gpr_sparse_forward.2}
  #allocation0 [shape = 'u32[]', space=smem, size = 0x4, offset = 0x4, fixed_abs, tag = 'smem constant byte address 0x4 - core index']
  #allocation1 [shape = 'u32[144,128]{1,0:T(1,128)}', space=vmem, size = 0x12000, scoped, tag = 'internal scratch']
  #allocation2 [shape = 'f32[128,32]{1,0:T(8,128)}', space=vmem, size = 0x10000, scoped, tag = 'scratch operand']
  #allocation3 [shape = 's32[1]{0}', space=sflag, size = 0x4, scoped, tag = 'scoped memory for gpr_sparse_forward.2']
  #allocation4 [shape = 'u8[512]{0}', space=smem, size = 0x200, scoped, tag = 'prefetched SMEM operand 0']
  #allocation5 [shape = 'u8[512]{0}', space=smem, size = 0x200, scoped, tag = 'prefetched SMEM operand 1']
  %s0 = inlined_call_operand.vmem [shape: s32[12], index: 0, kind: input, shape index: {}]
  %s1 = inlined_call_operand.vmem [shape: s32[4], index: 1, kind: input, shape index: {}]
  %s2 = inlined_call_operand.hbm [shape: bf16[512,512], index: 2, kind: input, shape index: {}]
  %s3 = inlined_call_operand.vmem [shape: bf16[512,32], index: 3, kind: input, shape index: {}]
  %s4 = inlined_call_operand.vmem [shape: bf16[32,32], index: 4, kind: input, shape index: {}]
  %s5 = inlined_call_operand.vmem [shape: f32[1,32], index: 5, kind: input, shape index: {}]
  %s6 = inlined_call_operand.vmem [shape: f32[32,1], index: 6, kind: input, shape index: {}]
  %s7 = inlined_call_operand.vmem [shape: bf16[512,32], index: 7, kind: output, shape index: {0}]
  %s8 = inlined_call_operand.vmem [shape: f32[512,1], index: 8, kind: output, shape index: {1}]
  %9 = xla_tuple %s7, %s8
  %s10 = sld [smem:[#allocation0]]
  $region77: #{gpr_sparse_forward.2} parent=0
    _
  %s12 = ssub.s32 1, %s10
  %s13 = scalar_select 0, %s12, %s10
  %s14 = sshll.u32 %s0, 4
  %s15 = int_to_ptr.vmem [resolvable:$true] %s14
  %17 = dma.vmem_to_smem %s15, 16, [#allocation4], [#allocation3]
  %s18 = sshll.u32 %s1, 4
  %s19 = int_to_ptr.vmem [resolvable:$true] %s18
  %21 = dma.vmem_to_smem %s19, 16, [#allocation5], [#allocation3]
  %22 = dma.done [#allocation3], 32
  %23 = sfence
  $region1: #{gpr_sparse_forward.2} parent=0
    #allocation6 [shape = 'u8[65536]{0}', space=vmem, size = 0x10000, scoped, tag = 'input window, operand 2']
    #allocation7 [shape = 's32[2]{0}', space=sflag, size = 0x8, scoped, tag = 'scoped memory for gpr_sparse_forward.2']
    %24 = vsyncpa [#allocation7], 0
    %s25 = scalar_lea.sflag [#allocation7], 1
    %26 = vsyncpa %s25, 0
    loop: start=0, step=1, limit=14
    $region2: #{gpr_sparse_forward.2} parent=1 // loop_pre_header
      _
    $region3: #{gpr_sparse_forward.2} parent=1 // loop_header
      %s28 = sphi 0, %s32
      %p29 = scmp.ge.s32.totalorder %s28, 14
      %s35 = sphi 0, %s47
      %s36 = sphi 0, %s43
      %s37 = sphi 0, %s35
      %s38 = sphi 0, %s36
      %s39 = sphi 0, %s37
      %s40 = sphi 0, %s38
      %s58 = sphi 0, %s60
      %s61 = sphi 0, %s58
      %s62 = sphi 0, %s61
      %s78 = sphi 0, %s62
      %s90 = sphi 0, %s92
      %s93 = sphi 0, %s90
      %s94 = sphi 0, %s93
      %s110 = sphi 0, %s94
      %s114 = sphi 0, %s114
      %s116 = sphi 0, %s114
      %s117 = sphi 0, %s116
      %s131 = sphi 0, %s117
      %s135 = sphi 0, %s135
      %s137 = sphi 0, %s135
      %s138 = sphi 0, %s137
      %s152 = sphi 0, %s138
      %s156 = sphi 0, %s156
      %s158 = sphi 0, %s156
      %s159 = sphi 0, %s158
      %s173 = sphi 0, %s159
      %s179 = sphi 0, %s181
      %s182 = sphi 0, %s179
      %s183 = sphi 0, %s182
      %s199 = sphi 0, %s183
      %s205 = sphi 0, %s207
      %s208 = sphi 0, %s205
      %s209 = sphi 0, %s208
      %s225 = sphi 0, %s209
    $region4: #{gpr_sparse_forward.2} parent=1 // loop_header_branch
      %31 = sbr.rel (%p29) target = $region8
    $region5: #{gpr_sparse_forward.2} parent=1 // loop_body
      %s33 = ssub.s32 %s28, 1
      %s34 = ssub.s32 %s28, 2
      %s41 = sadd.s32 1, %s36
      %p42 = scmp.ge.s32.totalorder %s41, 3
      %s43 = scalar_select %p42, 0, %s41
      %s44 = sadd.s32 1, %s35
      %s45 = scalar_select %p42, %s44, %s35
      %p46 = scmp.ge.s32.totalorder %s45, 4
      %s47 = scalar_select %p46, 0, %s45
      %s48 = smul.u32 %s35, 3
      %s49 = sadd.s32 %s48, %s36
      %s50 = sld [smem:[#allocation4 + %s49]]
      %s51 = smul.u32 %s47, 3
      %s52 = sadd.s32 %s51, %s43
      %s53 = sld [smem:[#allocation4 + %s52]]
      %s54 = ssub.s32 %s35, %s47
      %s55 = ssub.s32 %s50, %s53
      %s56 = sor.u32 %s54, %s55
      %p57 = scmp.eq.s32.totalorder %s56, 0
      %s59 = sadd.s32 %s58, 1
      %s60 = scalar_select %p57, %s58, %s59
      %p63 = pneg %p57
      %p64 = scmp.eq.s32.totalorder %s28, 11
      %p65 = por %p63, %p64
      %p66 = scmp.ne.s32.totalorder %s58, %s61
      %p67 = scmp.eq.s32.totalorder %s28, 0
      %p68 = por %p66, %p67
      %p69 = scmp.ne.s32.totalorder %s58, %s61
      %p70 = scmp.eq.s32.totalorder %s33, 11
      %p71 = por %p69, %p70
      %p72 = scmp.ne.s32.totalorder %s61, %s62
      %p73 = scmp.eq.s32.totalorder %s33, 0
      %p74 = por %p72, %p73
      %p75 = scmp.ne.s32.totalorder %s61, %s62
      %p76 = scmp.eq.s32.totalorder %s34, 11
      %p77 = por %p75, %p76
      %p79 = scmp.ne.s32.totalorder %s62, %s78
      %p80 = scmp.eq.s32.totalorder %s34, 0
      %p81 = por %p79, %p80
      %s82 = smul.u32 %s35, 3
      %s83 = sadd.s32 %s82, %s36
      %s84 = sld [smem:[#allocation4 + %s83]]
      %s85 = smul.u32 %s47, 3
      %s86 = sadd.s32 %s85, %s43
      %s87 = sld [smem:[#allocation4 + %s86]]
      %s88 = ssub.s32 %s84, %s87
      %p89 = scmp.eq.s32.totalorder %s88, 0
      %s91 = sadd.s32 %s90, 1
      %s92 = scalar_select %p89, %s90, %s91
      %p95 = pneg %p89
      %p96 = scmp.eq.s32.totalorder %s28, 11
      %p97 = por %p95, %p96
      %p98 = scmp.ne.s32.totalorder %s90, %s93
      %p99 = scmp.eq.s32.totalorder %s28, 0
      %p100 = por %p98, %p99
      %p101 = scmp.ne.s32.totalorder %s90, %s93
      %p102 = scmp.eq.s32.totalorder %s33, 11
      %p103 = por %p101, %p102
      %p104 = scmp.ne.s32.totalorder %s93, %s94
      %p105 = scmp.eq.s32.totalorder %s33, 0
      %p106 = por %p104, %p105
      %p107 = scmp.ne.s32.totalorder %s93, %s94
      %p108 = scmp.eq.s32.totalorder %s34, 11
      %p109 = por %p107, %p108
      %p111 = scmp.ne.s32.totalorder %s94, %s110
      %p112 = scmp.eq.s32.totalorder %s34, 0
      %p113 = por %p111, %p112
      %s115 = sadd.s32 %s114, 1
      %p118 = scmp.eq.s32.totalorder %s28, 11
      %p119 = scmp.ne.s32.totalorder %s114, %s116
      %p120 = scmp.eq.s32.totalorder %s28, 0
      %p121 = por %p119, %p120
      %p122 = scmp.ne.s32.totalorder %s114, %s116
      %p123 = scmp.eq.s32.totalorder %s33, 11
      %p124 = por %p122, %p123
      %p125 = scmp.ne.s32.totalorder %s116, %s117
      %p126 = scmp.eq.s32.totalorder %s33, 0
      %p127 = por %p125, %p126
      %p128 = scmp.ne.s32.totalorder %s116, %s117
      %p129 = scmp.eq.s32.totalorder %s34, 11
      %p130 = por %p128, %p129
      %p132 = scmp.ne.s32.totalorder %s117, %s131
      %p133 = scmp.eq.s32.totalorder %s34, 0
      %p134 = por %p132, %p133
      %s136 = sadd.s32 %s135, 1
      %p139 = scmp.eq.s32.totalorder %s28, 11
      %p140 = scmp.ne.s32.totalorder %s135, %s137
      %p141 = scmp.eq.s32.totalorder %s28, 0
      %p142 = por %p140, %p141
      %p143 = scmp.ne.s32.totalorder %s135, %s137
      %p144 = scmp.eq.s32.totalorder %s33, 11
      %p145 = por %p143, %p144
      %p146 = scmp.ne.s32.totalorder %s137, %s138
      %p147 = scmp.eq.s32.totalorder %s33, 0
      %p148 = por %p146, %p147
      %p149 = scmp.ne.s32.totalorder %s137, %s138
      %p150 = scmp.eq.s32.totalorder %s34, 11
      %p151 = por %p149, %p150
      %p153 = scmp.ne.s32.totalorder %s138, %s152
      %p154 = scmp.eq.s32.totalorder %s34, 0
      %p155 = por %p153, %p154
      %s157 = sadd.s32 %s156, 1
      %p160 = scmp.eq.s32.totalorder %s28, 11
      %p161 = scmp.ne.s32.totalorder %s156, %s158
      %p162 = scmp.eq.s32.totalorder %s28, 0
      %p163 = por %p161, %p162
      %p164 = scmp.ne.s32.totalorder %s156, %s158
      %p165 = scmp.eq.s32.totalorder %s33, 11
      %p166 = por %p164, %p165
      %p167 = scmp.ne.s32.totalorder %s158, %s159
      %p168 = scmp.eq.s32.totalorder %s33, 0
      %p169 = por %p167, %p168
      %p170 = scmp.ne.s32.totalorder %s158, %s159
      %p171 = scmp.eq.s32.totalorder %s34, 11
      %p172 = por %p170, %p171
      %p174 = scmp.ne.s32.totalorder %s159, %s173
      %p175 = scmp.eq.s32.totalorder %s34, 0
      %p176 = por %p174, %p175
      %s177 = ssub.s32 %s35, %s47
      %p178 = scmp.eq.s32.totalorder %s177, 0
      %s180 = sadd.s32 %s179, 1
      %s181 = scalar_select %p178, %s179, %s180
      %p184 = pneg %p178
      %p185 = scmp.eq.s32.totalorder %s28, 11
      %p186 = por %p184, %p185
      %p187 = scmp.ne.s32.totalorder %s179, %s182
      %p188 = scmp.eq.s32.totalorder %s28, 0
      %p189 = por %p187, %p188
      %p190 = scmp.ne.s32.totalorder %s179, %s182
      %p191 = scmp.eq.s32.totalorder %s33, 11
      %p192 = por %p190, %p191
      %p193 = scmp.ne.s32.totalorder %s182, %s183
      %p194 = scmp.eq.s32.totalorder %s33, 0
      %p195 = por %p193, %p194
      %p196 = scmp.ne.s32.totalorder %s182, %s183
      %p197 = scmp.eq.s32.totalorder %s34, 11
      %p198 = por %p196, %p197
      %p200 = scmp.ne.s32.totalorder %s183, %s199
      %p201 = scmp.eq.s32.totalorder %s34, 0
      %p202 = por %p200, %p201
      %s203 = ssub.s32 %s35, %s47
      %p204 = scmp.eq.s32.totalorder %s203, 0
      %s206 = sadd.s32 %s205, 1
      %s207 = scalar_select %p204, %s205, %s206
      %p210 = pneg %p204
      %p211 = scmp.eq.s32.totalorder %s28, 11
      %p212 = por %p210, %p211
      %p213 = scmp.ne.s32.totalorder %s205, %s208
      %p214 = scmp.eq.s32.totalorder %s28, 0
      %p215 = por %p213, %p214
      %p216 = scmp.ne.s32.totalorder %s205, %s208
      %p217 = scmp.eq.s32.totalorder %s33, 11
      %p218 = por %p216, %p217
      %p219 = scmp.ne.s32.totalorder %s208, %s209
      %p220 = scmp.eq.s32.totalorder %s33, 0
      %p221 = por %p219, %p220
      %p222 = scmp.ne.s32.totalorder %s208, %s209
      %p223 = scmp.eq.s32.totalorder %s34, 11
      %p224 = por %p222, %p223
      %p226 = scmp.ne.s32.totalorder %s209, %s225
      %p227 = scmp.eq.s32.totalorder %s34, 0
      %p228 = por %p226, %p227
      %p229 = scmp.le.s32.totalorder 1, %s28
      %p230 = scmp.lt.s32.totalorder %s28, 13
      %p231 = pnand %p229, %p230
      %p232 = pneg %p231
      // Predicated region
      $region9: #{gpr_sparse_forward.2} parent=5 // pred_check
        _
      $region10: #{gpr_sparse_forward.2} parent=5 // pred_check_branch
        %234 = sbr.rel (%p231) target = $region12
      $region11: #{gpr_sparse_forward.2} parent=5 // pred_region
        %s235 = ssub.s32 %s28, 1
        // Predicated region
        $region13: #{gpr_sparse_forward.2} parent=11 // pred_check
          %p236 = pneg %p127
        $region14: #{gpr_sparse_forward.2} parent=11 // pred_check_branch
          %238 = sbr.rel (%p236) target = $region16
        $region15: #{gpr_sparse_forward.2} parent=11 // pred_region
          _
        $region16: #{gpr_sparse_forward.2} parent=11 // pred_fallthru
          _
        // Predicated region
        $region17: #{gpr_sparse_forward.2} parent=11 // pred_check
          %p239 = pneg %p148
        $region18: #{gpr_sparse_forward.2} parent=11 // pred_check_branch
          %241 = sbr.rel (%p239) target = $region20
        $region19: #{gpr_sparse_forward.2} parent=11 // pred_region
          _
        $region20: #{gpr_sparse_forward.2} parent=11 // pred_fallthru
          _
        // Predicated region
        $region21: #{gpr_sparse_forward.2} parent=11 // pred_check
          %p242 = pneg %p169
        $region22: #{gpr_sparse_forward.2} parent=11 // pred_check_branch
          %244 = sbr.rel (%p242) target = $region24
        $region23: #{gpr_sparse_forward.2} parent=11 // pred_region
          _
        $region24: #{gpr_sparse_forward.2} parent=11 // pred_fallthru
          _
      $region12: #{gpr_sparse_forward.2} parent=5 // pred_fallthru
        _
      %p245 = scmp.lt.s32.totalorder %s28, 12
      // Predicated region
      $region25: #{gpr_sparse_forward.2} parent=5 // pred_check
        %p246 = pneg %p245
      $region26: #{gpr_sparse_forward.2} parent=5 // pred_check_branch
        %248 = sbr.rel (%p246) target = $region28
      $region27: #{gpr_sparse_forward.2} parent=5 // pred_region
        // Predicated region
        $region29: #{gpr_sparse_forward.2} parent=27 // pred_check
          %p249 = pneg %p68
        $region30: #{gpr_sparse_forward.2} parent=27 // pred_check_branch
          %251 = sbr.rel (%p249) target = $region32
        $region31: #{gpr_sparse_forward.2} parent=27 // pred_region
          %s252 = sand.u32 %s58, 1
          %s253 = scalar_lea.sflag [#allocation7], %s252
          %s254 = sand.u32 %s58, 1
          %s255 = smul.addr %s254, 64
          %s256 = scalar_lea.vmem [#allocation6], %s255
          %s257 = smul.u32 %s35, 3
          %s258 = sadd.s32 %s257, %s36
          %s259 = sld [smem:[#allocation4 + %s258]]
          %s260 = smul.u32 16, %s35
          %s262 = ssub.s32 1024, 1024
          %263 = vsyncadd %s253, %s262
          %s264 = smul.addr %s260, 4
          %s265 = sadd.s32 %s259, %s264
          %s266 = smul.addr %s265, 64
          %s267 = scalar_lea.hbm %s2, %s266
          %s268 = sshll.u32 %s256, 4
          %s269 = int_to_ptr.vmem [resolvable:$true] %s268
          %274 = dma.hbm_to_vmem [thread:$0]  %s267, 1024, %s269, %s253, 256, 64, 4
        $region32: #{gpr_sparse_forward.2} parent=27 // pred_fallthru
          _
        // Predicated region
        $region33: #{gpr_sparse_forward.2} parent=27 // pred_check
          %p275 = pneg %p100
        $region34: #{gpr_sparse_forward.2} parent=27 // pred_check_branch
          %277 = sbr.rel (%p275) target = $region36
        $region35: #{gpr_sparse_forward.2} parent=27 // pred_region
          %s278 = smul.u32 %s35, 3
          %s279 = sadd.s32 %s278, %s36
          %s280 = sld [smem:[#allocation4 + %s279]]
          %s281 = smul.u32 16, %s280
          %p282 = scmp.lt.s32.totalorder %s281, 63
          %s283 = scalar_select %p282, %s281, 63
          %s284 = smul.addr %s283, 4
          %s285 = scalar_lea.vmem %s3, %s284
          %s286 = smul.u32 %s35, 3
          %s287 = sadd.s32 %s286, %s36
          %s288 = sld [smem:[#allocation4 + %s287]]
          %s289 = smul.u32 16, %s288
        $region36: #{gpr_sparse_forward.2} parent=27 // pred_fallthru
          _
      $region28: #{gpr_sparse_forward.2} parent=5 // pred_fallthru
        _
      %p290 = scmp.le.s32.totalorder 1, %s28
      %p291 = scmp.lt.s32.totalorder %s28, 13
      %p292 = pnand %p290, %p291
      %p293 = pneg %p292
      // Predicated region
      $region37: #{gpr_sparse_forward.2} parent=5 // pred_check
        _
      $region38: #{gpr_sparse_forward.2} parent=5 // pred_check_branch
        %295 = sbr.rel (%p292) target = $region40
      $region39: #{gpr_sparse_forward.2} parent=5 // pred_region
        %s296 = ssub.s32 %s28, 1
        %s297 = sand.u32 %s61, 1
        %s298 = scalar_lea.sflag [#allocation7], %s297
        %s299 = sand.u32 %s61, 1
        %s300 = smul.addr %s299, 64
        %s301 = scalar_lea.vmem [#allocation6], %s300
        // Predicated region
        $region41: #{gpr_sparse_forward.2} parent=39 // pred_check
          %p302 = pneg %p74
        $region42: #{gpr_sparse_forward.2} parent=39 // pred_check_branch
          %304 = sbr.rel (%p302) target = $region44
        $region43: #{gpr_sparse_forward.2} parent=39 // pred_region
          %305 = dma.done %s298, 1024
        $region44: #{gpr_sparse_forward.2} parent=39 // pred_fallthru
          _
        %s306 = sand.u32 %s61, 1
        %s307 = scalar_lea.sflag [#allocation7], %s306
        %s308 = sand.u32 %s61, 1
        %s309 = smul.addr %s308, 64
        %s310 = scalar_lea.vmem [#allocation6], %s309
        %p311 = pneg %p74
        %p312 = pneg %p71
        %s313 = smul.u32 %s37, 3
        %s314 = sadd.s32 %s313, %s38
        %s315 = sld [smem:[#allocation4 + %s314]]
        %s316 = smul.u32 16, %s315
        %p317 = scmp.lt.s32.totalorder %s316, 63
        %s318 = scalar_select %p317, %s316, 63
        %s319 = smul.addr %s318, 4
        %s320 = scalar_lea.vmem %s3, %s319
        %p321 = pneg %p106
        %p322 = pneg %p103
        %p323 = pneg %p127
        %p324 = pneg %p124
        %p325 = pneg %p148
        %p326 = pneg %p145
        %p327 = pneg %p169
        %p328 = pneg %p166
        %p329 = pneg %p195
        %p330 = pneg %p192
        %s331 = smul.u32 16, %s37
        %p332 = scmp.lt.s32.totalorder %s331, 63
        %s333 = scalar_select %p332, %s331, 63
        %s334 = smul.addr %s333, 4
        %s335 = scalar_lea.vmem %s7, %s334
        %p336 = pneg %p221
        %p337 = pneg %p218
        %s338 = smul.u32 16, %s37
        %p339 = scmp.lt.s32.totalorder %s338, 63
        %s340 = scalar_select %p339, %s338, 63
        %s341 = smul.addr %s340, 8
        %s342 = scalar_lea.vmem %s8, %s341
        %s343 = smul.u32 %s37, 3
        %s344 = sadd.s32 %s343, %s38
        %s345 = sld [smem:[#allocation4 + %s344]]
        %s346 = smul.u32 16, %s37
        %s347 = smul.u32 %s37, 3
        %s348 = sadd.s32 %s347, %s38
        %s349 = sld [smem:[#allocation4 + %s348]]
        %s350 = smul.u32 16, %s349
        %p351 = scmp.lt.s32.totalorder %s350, 63
        %s352 = scalar_select %p351, %s350, 63
        %s353 = smul.addr %s352, 4
        %s354 = scalar_lea.vmem %s3, %s353
        %s355 = smul.u32 %s37, 3
        %s356 = sadd.s32 %s355, %s38
        %s357 = sld [smem:[#allocation4 + %s356]]
        %s358 = smul.u32 16, %s357
        %s359 = smul.u32 16, %s37
        %p360 = scmp.lt.s32.totalorder %s359, 63
        %s361 = scalar_select %p360, %s359, 63
        %s362 = smul.addr %s361, 4
        %s363 = scalar_lea.vmem %s7, %s362
        %s364 = smul.u32 16, %s37
        %s365 = smul.u32 16, %s37
        %p366 = scmp.lt.s32.totalorder %s365, 63
        %s367 = scalar_select %p366, %s365, 63
        %s368 = smul.addr %s367, 8
        %s369 = scalar_lea.vmem %s8, %s368
        %s370 = smul.u32 16, %s37
        %p372 = scmp.eq.s32.totalorder %s38, 0
        // Predicated region
        $region45: #{gpr_sparse_forward.2} parent=39 // pred_check
          %p373 = pneg %p372
        $region46: #{gpr_sparse_forward.2} parent=39 // pred_check_branch
          %375 = sbr.rel (%p373) target = $region48
        $region47: #{gpr_sparse_forward.2} parent=39 // pred_region
          %vm376 = vcmask 261120
          %377 = vst.msk [vmem:[#allocation2] sm:$0xff] %vm376, 0.0
          %378 = vst.msk [vmem:[#allocation2 + $0x8] sm:$0xff] %vm376, 0.0
          %379 = vst.msk [vmem:[#allocation2 + $0x10] sm:$0xff] %vm376, 0.0
          %380 = vst.msk [vmem:[#allocation2 + $0x18] sm:$0xff] %vm376, 0.0
          %381 = vst.msk [vmem:[#allocation2 + $0x20] sm:$0xff] %vm376, 0.0
          %382 = vst.msk [vmem:[#allocation2 + $0x28] sm:$0xff] %vm376, 0.0
          %383 = vst.msk [vmem:[#allocation2 + $0x30] sm:$0xff] %vm376, 0.0
          %384 = vst.msk [vmem:[#allocation2 + $0x38] sm:$0xff] %vm376, 0.0
          %385 = vst.msk [vmem:[#allocation2 + $0x40] sm:$0xff] %vm376, 0.0
          %386 = vst.msk [vmem:[#allocation2 + $0x48] sm:$0xff] %vm376, 0.0
          %387 = vst.msk [vmem:[#allocation2 + $0x50] sm:$0xff] %vm376, 0.0
          %388 = vst.msk [vmem:[#allocation2 + $0x58] sm:$0xff] %vm376, 0.0
          %389 = vst.msk [vmem:[#allocation2 + $0x60] sm:$0xff] %vm376, 0.0
          %390 = vst.msk [vmem:[#allocation2 + $0x68] sm:$0xff] %vm376, 0.0
          %391 = vst.msk [vmem:[#allocation2 + $0x70] sm:$0xff] %vm376, 0.0
          %392 = vst.msk [vmem:[#allocation2 + $0x78] sm:$0xff] %vm376, 0.0
        $region48: #{gpr_sparse_forward.2} parent=39 // pred_fallthru
          _
        %s393 = sld [smem:[#allocation5 + %s37]]
        %p394 = scmp.lt.s32.totalorder %s38, %s393
        // Predicated region
        $region49: #{gpr_sparse_forward.2} parent=39 // pred_check
          %p395 = pneg %p394
        $region50: #{gpr_sparse_forward.2} parent=39 // pred_check_branch
          %397 = sbr.rel (%p395) target = $region52
        $region51: #{gpr_sparse_forward.2} parent=39 // pred_region
          %v398 = vld [vmem:[#allocation2] sm:$0xff]
          %v399 = vld [vmem:[#allocation2 + $0x8] sm:$0xff]
          %v400 = vld [vmem:[#allocation2 + $0x10] sm:$0xff]
          %v401 = vld [vmem:[#allocation2 + $0x18] sm:$0xff]
          %v402 = vld [vmem:[#allocation2 + $0x20] sm:$0xff]
          %v403 = vld [vmem:[#allocation2 + $0x28] sm:$0xff]
          %v404 = vld [vmem:[#allocation2 + $0x30] sm:$0xff]
          %v405 = vld [vmem:[#allocation2 + $0x38] sm:$0xff]
          %v406 = vld [vmem:[#allocation2 + $0x40] sm:$0xff]
          %v407 = vld [vmem:[#allocation2 + $0x48] sm:$0xff]
          %v408 = vld [vmem:[#allocation2 + $0x50] sm:$0xff]
          %v409 = vld [vmem:[#allocation2 + $0x58] sm:$0xff]
          %v410 = vld [vmem:[#allocation2 + $0x60] sm:$0xff]
          %v411 = vld [vmem:[#allocation2 + $0x68] sm:$0xff]
          %v412 = vld [vmem:[#allocation2 + $0x70] sm:$0xff]
          %v413 = vld [vmem:[#allocation2 + $0x78] sm:$0xff]
          %v414 = vld [vmem:[%s301] sm:$0xf]
          %v415 = vld [vmem:[%s301 + $0x4] sm:$0xf]
          %v416 = vld [vmem:[%s301 + $0x8] sm:$0xf]
          %v417 = vld [vmem:[%s301 + $0xc] sm:$0xf]
          %v418 = vld [vmem:[%s301 + $0x10] sm:$0xf]
          %v419 = vld [vmem:[%s301 + $0x14] sm:$0xf]
          %v420 = vld [vmem:[%s301 + $0x18] sm:$0xf]
          %v421 = vld [vmem:[%s301 + $0x1c] sm:$0xf]
          %v422 = vld [vmem:[%s301 + $0x20] sm:$0xf]
          %v423 = vld [vmem:[%s301 + $0x24] sm:$0xf]
          %v424 = vld [vmem:[%s301 + $0x28] sm:$0xf]
          %v425 = vld [vmem:[%s301 + $0x2c] sm:$0xf]
          %v426 = vld [vmem:[%s301 + $0x30] sm:$0xf]
          %v427 = vld [vmem:[%s301 + $0x34] sm:$0xf]
          %v428 = vld [vmem:[%s301 + $0x38] sm:$0xf]
          %v429 = vld [vmem:[%s301 + $0x3c] sm:$0xf]
          %v430 = vld [vmem:[%s354] sm:$0xf]
          %v431 = vld [vmem:[%s354 + $0x4] sm:$0xf]
          %v432 = vld [vmem:[%s354 + $0x8] sm:$0xf]
          %v433 = vld [vmem:[%s354 + $0xc] sm:$0xf]
          %v434 = vld [vmem:[%s354 + $0x10] sm:$0xf]
          %v435 = vld [vmem:[%s354 + $0x14] sm:$0xf]
          %v436 = vld [vmem:[%s354 + $0x18] sm:$0xf]
          %v437 = vld [vmem:[%s354 + $0x1c] sm:$0xf]
          %v438 = vld [vmem:[%s354 + $0x20] sm:$0xf]
          %v439 = vld [vmem:[%s354 + $0x24] sm:$0xf]
          %v440 = vld [vmem:[%s354 + $0x28] sm:$0xf]
          %v441 = vld [vmem:[%s354 + $0x2c] sm:$0xf]
          %v442 = vld [vmem:[%s354 + $0x30] sm:$0xf]
          %v443 = vld [vmem:[%s354 + $0x34] sm:$0xf]
          %v444 = vld [vmem:[%s354 + $0x38] sm:$0xf]
          %v445 = vld [vmem:[%s354 + $0x3c] sm:$0xf]
          %v462 = vunpack.c.l.b16 %v414
          %v463 = vunpack.c.l.b16 %v415
          %v464 = vunpack.c.l.b16 %v416
          %v465 = vunpack.c.l.b16 %v417
          %v466 = vunpack.c.l.b16 %v418
          %v467 = vunpack.c.l.b16 %v419
          %v468 = vunpack.c.l.b16 %v420
          %v469 = vunpack.c.l.b16 %v421
          %v470 = vunpack.c.l.b16 %v422
          %v471 = vunpack.c.l.b16 %v423
          %v472 = vunpack.c.l.b16 %v424
          %v473 = vunpack.c.l.b16 %v425
          %v474 = vunpack.c.l.b16 %v426
          %v475 = vunpack.c.l.b16 %v427
          %v476 = vunpack.c.l.b16 %v428
          %v477 = vunpack.c.l.b16 %v429
          %v478 = vpack.c.b16 %v463, %v462
          %v479 = vpack.c.b16 %v465, %v464
          %v480 = vpack.c.b16 %v467, %v466
          %v481 = vpack.c.b16 %v469, %v468
          %v482 = vpack.c.b16 %v471, %v470
          %v483 = vpack.c.b16 %v473, %v472
          %v484 = vpack.c.b16 %v475, %v474
          %v485 = vpack.c.b16 %v477, %v476
          %v510 = vunpack.c.l.b16 %v430
          %v511 = vunpack.c.l.b16 %v431
          %v512 = vunpack.c.l.b16 %v432
          %v513 = vunpack.c.l.b16 %v433
          %v514 = vunpack.c.l.b16 %v434
          %v515 = vunpack.c.l.b16 %v435
          %v516 = vunpack.c.l.b16 %v436
          %v517 = vunpack.c.l.b16 %v437
          %v518 = vunpack.c.l.b16 %v438
          %v519 = vunpack.c.l.b16 %v439
          %v520 = vunpack.c.l.b16 %v440
          %v521 = vunpack.c.l.b16 %v441
          %v522 = vunpack.c.l.b16 %v442
          %v523 = vunpack.c.l.b16 %v443
          %v524 = vunpack.c.l.b16 %v444
          %v525 = vunpack.c.l.b16 %v445
          %v526 = vpack.c.b16 %v511, %v510
          %v527 = vpack.c.b16 %v513, %v512
          %v528 = vpack.c.b16 %v515, %v514
          %v529 = vpack.c.b16 %v517, %v516
          %v530 = vpack.c.b16 %v519, %v518
          %v531 = vpack.c.b16 %v521, %v520
          %v532 = vpack.c.b16 %v523, %v522
          %v533 = vpack.c.b16 %v525, %v524
          %542 = vmatprep.subr.bf16.mxu0 0
          %543 = vmatpush1.bf16.msra.mxu0 %v526
          %544 = vmatprep.subr.bf16.mxu0 0
          %545 = vmatpush1.bf16.msra.mxu0 %v527
          %546 = vmatprep.subr.bf16.mxu0 0
          %547 = vmatpush1.bf16.msra.mxu0 %v528
          %548 = vmatprep.subr.bf16.mxu0 0
          %549 = vmatpush1.bf16.msra.mxu0 %v529
          %550 = vmatprep.subr.bf16.mxu0 0
          %551 = vmatpush1.bf16.msra.mxu0 %v530
          %552 = vmatprep.subr.bf16.mxu0 0
          %553 = vmatpush1.bf16.msra.mxu0 %v531
          %554 = vmatprep.subr.bf16.mxu0 0
          %555 = vmatpush1.bf16.msra.mxu0 %v532
          %556 = vmatprep.subr.bf16.mxu0 0
          %557 = vmatpush1.bf16.msra.mxu0 %v533
          %558 = vmatprep.subr.bf16.mxu0 0
          %559 = vmatpush1.bf16.msra.mxu0 0
          %560 = vmatprep.subr.bf16.mxu0 0
          %561 = vmatpush1.bf16.msra.mxu0 0
          %562 = vmatprep.subr.bf16.mxu0 0
          %563 = vmatpush1.bf16.msra.mxu0 0
          %564 = vmatprep.subr.bf16.mxu0 0
          %565 = vmatpush1.bf16.msra.mxu0 0
          %566 = vmatprep.subr.bf16.mxu0 0
          %567 = vmatpush1.bf16.msra.mxu0 0
          %568 = vmatprep.subr.bf16.mxu0 0
          %569 = vmatpush1.bf16.msra.mxu0 0
          %570 = vmatprep.subr.bf16.mxu0 0
          %571 = vmatpush1.bf16.msra.mxu0 0
          %572 = vmatprep.subr.bf16.mxu0 0
          %573 = vmatpush1.bf16.msra.mxu0 0
          %574 = vmatprep.mubr.bf16.mxu0 0
          %575 = vmatmul.mubr.bf16.gmra.mrb[0].mxu0 %v478
          %v576 = vpop.f32.mrb[0].mxu0
          %v577 = vadd.f32 0.0, %v576
          %v578 = vpop.f32.mrb[0].mxu0
          %v579 = vpop.f32.mrb[0].mxu0
          %v580 = vadd.f32 0.0, %v579
          %v581 = vpop.f32.mrb[0].mxu0
          %582 = vmatprep.mubr.bf16.mxu0 0
          %583 = vmatmul.mubr.bf16.gmra.mrb[0].mxu0 %v479
          %v584 = vpop.f32.mrb[0].mxu0
          %v585 = vadd.f32 0.0, %v584
          %v586 = vpop.f32.mrb[0].mxu0
          %v587 = vpop.f32.mrb[0].mxu0
          %v588 = vadd.f32 0.0, %v587
          %v589 = vpop.f32.mrb[0].mxu0
          %590 = vmatprep.mubr.bf16.mxu0 0
          %591 = vmatmul.mubr.bf16.gmra.mrb[0].mxu0 %v480
          %v592 = vpop.f32.mrb[0].mxu0
          %v593 = vadd.f32 0.0, %v592
          %v594 = vpop.f32.mrb[0].mxu0
          %v595 = vpop.f32.mrb[0].mxu0
          %v596 = vadd.f32 0.0, %v595
          %v597 = vpop.f32.mrb[0].mxu0
          %598 = vmatprep.mubr.bf16.mxu0 0
          %599 = vmatmul.mubr.bf16.gmra.mrb[0].mxu0 %v481
          %v600 = vpop.f32.mrb[0].mxu0
          %v601 = vadd.f32 0.0, %v600
          %v602 = vpop.f32.mrb[0].mxu0
          %v603 = vpop.f32.mrb[0].mxu0
          %v604 = vadd.f32 0.0, %v603
          %v605 = vpop.f32.mrb[0].mxu0
          %606 = vmatprep.mubr.bf16.mxu0 0
          %607 = vmatmul.mubr.bf16.gmra.mrb[0].mxu0 %v482
          %v608 = vpop.f32.mrb[0].mxu0
          %v609 = vadd.f32 0.0, %v608
          %v610 = vpop.f32.mrb[0].mxu0
          %v611 = vpop.f32.mrb[0].mxu0
          %v612 = vadd.f32 0.0, %v611
          %v613 = vpop.f32.mrb[0].mxu0
          %614 = vmatprep.mubr.bf16.mxu0 0
          %615 = vmatmul.mubr.bf16.gmra.mrb[0].mxu0 %v483
          %v616 = vpop.f32.mrb[0].mxu0
          %v617 = vadd.f32 0.0, %v616
          %v618 = vpop.f32.mrb[0].mxu0
          %v619 = vpop.f32.mrb[0].mxu0
          %v620 = vadd.f32 0.0, %v619
          %v621 = vpop.f32.mrb[0].mxu0
          %622 = vmatprep.mubr.bf16.mxu0 0
          %623 = vmatmul.mubr.bf16.gmra.mrb[0].mxu0 %v484
          %v624 = vpop.f32.mrb[0].mxu0
          %v625 = vadd.f32 0.0, %v624
          %v626 = vpop.f32.mrb[0].mxu0
          %v627 = vpop.f32.mrb[0].mxu0
          %v628 = vadd.f32 0.0, %v627
          %v629 = vpop.f32.mrb[0].mxu0
          %630 = vmatprep.mubr.bf16.mxu0 0
          %631 = vmatmul.mubr.bf16.gmra.mrb[0].mxu0 %v485
          %v632 = vpop.f32.mrb[0].mxu0
          %v633 = vadd.f32 0.0, %v632
          %v634 = vpop.f32.mrb[0].mxu0
          %v635 = vpop.f32.mrb[0].mxu0
          %v636 = vadd.f32 0.0, %v635
          %v637 = vpop.f32.mrb[0].mxu0
          %638 = vdwg.mxu0
          %v639 = vadd.f32 %v398, %v577
          %v640 = vadd.f32 %v399, %v580
          %v641 = vadd.f32 %v400, %v585
          %v642 = vadd.f32 %v401, %v588
          %v643 = vadd.f32 %v402, %v593
          %v644 = vadd.f32 %v403, %v596
          %v645 = vadd.f32 %v404, %v601
          %v646 = vadd.f32 %v405, %v604
          %v647 = vadd.f32 %v406, %v609
          %v648 = vadd.f32 %v407, %v612
          %v649 = vadd.f32 %v408, %v617
          %v650 = vadd.f32 %v409, %v620
          %v651 = vadd.f32 %v410, %v625
          %v652 = vadd.f32 %v411, %v628
          %v653 = vadd.f32 %v412, %v633
          %v654 = vadd.f32 %v413, %v636
          %vm655 = vcmask 261120
          %656 = vst.msk [vmem:[#allocation2] sm:$0xff] %vm655, %v639
          %657 = vst.msk [vmem:[#allocation2 + $0x8] sm:$0xff] %vm655, %v640
          %658 = vst.msk [vmem:[#allocation2 + $0x10] sm:$0xff] %vm655, %v641
          %659 = vst.msk [vmem:[#allocation2 + $0x18] sm:$0xff] %vm655, %v642
          %660 = vst.msk [vmem:[#allocation2 + $0x20] sm:$0xff] %vm655, %v643
          %661 = vst.msk [vmem:[#allocation2 + $0x28] sm:$0xff] %vm655, %v644
          %662 = vst.msk [vmem:[#allocation2 + $0x30] sm:$0xff] %vm655, %v645
          %663 = vst.msk [vmem:[#allocation2 + $0x38] sm:$0xff] %vm655, %v646
          %664 = vst.msk [vmem:[#allocation2 + $0x40] sm:$0xff] %vm655, %v647
          %665 = vst.msk [vmem:[#allocation2 + $0x48] sm:$0xff] %vm655, %v648
          %666 = vst.msk [vmem:[#allocation2 + $0x50] sm:$0xff] %vm655, %v649
          %667 = vst.msk [vmem:[#allocation2 + $0x58] sm:$0xff] %vm655, %v650
          %668 = vst.msk [vmem:[#allocation2 + $0x60] sm:$0xff] %vm655, %v651
          %669 = vst.msk [vmem:[#allocation2 + $0x68] sm:$0xff] %vm655, %v652
          %670 = vst.msk [vmem:[#allocation2 + $0x70] sm:$0xff] %vm655, %v653
          %671 = vst.msk [vmem:[#allocation2 + $0x78] sm:$0xff] %vm655, %v654
        $region52: #{gpr_sparse_forward.2} parent=39 // pred_fallthru
          _
        %p672 = scmp.eq.s32.totalorder %s38, 2
        // Predicated region
        $region53: #{gpr_sparse_forward.2} parent=39 // pred_check
          %p673 = pneg %p672
        $region54: #{gpr_sparse_forward.2} parent=39 // pred_check_branch
          %675 = sbr.rel (%p673) target = $region56
        $region55: #{gpr_sparse_forward.2} parent=39 // pred_region
          %v676 = vld [vmem:[#allocation2] sm:$0xff]
          %v677 = vld [vmem:[#allocation2 + $0x8] sm:$0xff]
          %v678 = vld [vmem:[#allocation2 + $0x10] sm:$0xff]
          %v679 = vld [vmem:[#allocation2 + $0x18] sm:$0xff]
          %v680 = vld [vmem:[#allocation2 + $0x20] sm:$0xff]
          %v681 = vld [vmem:[#allocation2 + $0x28] sm:$0xff]
          %v682 = vld [vmem:[#allocation2 + $0x30] sm:$0xff]
          %v683 = vld [vmem:[#allocation2 + $0x38] sm:$0xff]
          %v684 = vld [vmem:[#allocation2 + $0x40] sm:$0xff]
          %v685 = vld [vmem:[#allocation2 + $0x48] sm:$0xff]
          %v686 = vld [vmem:[#allocation2 + $0x50] sm:$0xff]
          %v687 = vld [vmem:[#allocation2 + $0x58] sm:$0xff]
          %v688 = vld [vmem:[#allocation2 + $0x60] sm:$0xff]
          %v689 = vld [vmem:[#allocation2 + $0x68] sm:$0xff]
          %v690 = vld [vmem:[#allocation2 + $0x70] sm:$0xff]
          %v691 = vld [vmem:[#allocation2 + $0x78] sm:$0xff]
          %v692 = vmax.f32 %v676, 0.0
          %v693 = vmax.f32 %v677, 0.0
          %v694 = vmax.f32 %v678, 0.0
          %v695 = vmax.f32 %v679, 0.0
          %v696 = vmax.f32 %v680, 0.0
          %v697 = vmax.f32 %v681, 0.0
          %v698 = vmax.f32 %v682, 0.0
          %v699 = vmax.f32 %v683, 0.0
          %v700 = vmax.f32 %v684, 0.0
          %v701 = vmax.f32 %v685, 0.0
          %v702 = vmax.f32 %v686, 0.0
          %v703 = vmax.f32 %v687, 0.0
          %v704 = vmax.f32 %v688, 0.0
          %v705 = vmax.f32 %v689, 0.0
          %v706 = vmax.f32 %v690, 0.0
          %v707 = vmax.f32 %v691, 0.0
          %v708 = vld [vmem:[%s6] sm:$0xff]
          %v709 = vld [vmem:[%s6 + $0x8] sm:$0xff]
          %v710 = vld [vmem:[%s6 + $0x10] sm:$0xff]
          %v711 = vld [vmem:[%s6 + $0x18] sm:$0xff]
          %vm712 = vcmask 261120
          %v714 = vsel %vm712, %v692, 0
          %v717 = vsel %vm712, %v693, 0
          %v720 = vsel %vm712, %v694, 0
          %v723 = vsel %vm712, %v695, 0
          %v726 = vsel %vm712, %v696, 0
          %v729 = vsel %vm712, %v697, 0
          %v732 = vsel %vm712, %v698, 0
          %v735 = vsel %vm712, %v699, 0
          %v738 = vsel %vm712, %v700, 0
          %v741 = vsel %vm712, %v701, 0
          %v744 = vsel %vm712, %v702, 0
          %v747 = vsel %vm712, %v703, 0
          %v750 = vsel %vm712, %v704, 0
          %v753 = vsel %vm712, %v705, 0
          %v756 = vsel %vm712, %v706, 0
          %v759 = vsel %vm712, %v707, 0
          %761 = vmatprep.subr.mxu0 0.0
          %762 = vmatpush1.msra.mxu0 %v708
          %763 = vmatprep.subr.mxu0 0.0
          %764 = vmatpush1.msra.mxu0 %v709
          %765 = vmatprep.subr.mxu0 0.0
          %766 = vmatpush1.msra.mxu0 %v710
          %767 = vmatprep.subr.mxu0 0.0
          %768 = vmatpush1.msra.mxu0 %v711
          %769 = vmatprep.subr.mxu0 0.0
          %770 = vmatpush1.msra.mxu0 0.0
          %771 = vmatprep.subr.mxu0 0.0
          %772 = vmatpush1.msra.mxu0 0.0
          %773 = vmatprep.subr.mxu0 0.0
          %774 = vmatpush1.msra.mxu0 0.0
          %775 = vmatprep.subr.mxu0 0.0
          %776 = vmatpush1.msra.mxu0 0.0
          %777 = vmatprep.subr.mxu0 0.0
          %778 = vmatpush1.msra.mxu0 0.0
          %779 = vmatprep.subr.mxu0 0.0
          %780 = vmatpush1.msra.mxu0 0.0
          %781 = vmatprep.subr.mxu0 0.0
          %782 = vmatpush1.msra.mxu0 0.0
          %783 = vmatprep.subr.mxu0 0.0
          %784 = vmatpush1.msra.mxu0 0.0
          %785 = vmatprep.subr.mxu0 0.0
          %786 = vmatpush1.msra.mxu0 0.0
          %787 = vmatprep.subr.mxu0 0.0
          %788 = vmatpush1.msra.mxu0 0.0
          %789 = vmatprep.subr.mxu0 0.0
          %790 = vmatpush1.msra.mxu0 0.0
          %791 = vmatprep.subr.mxu0 0.0
          %792 = vmatpush1.msra.mxu0 0.0
          %793 = vmatprep.subr.mxu0 0.0
          %794 = vmatpush1.msra.mxu0 0.0
          %795 = vmatprep.subr.mxu0 0.0
          %796 = vmatpush1.msra.mxu0 0.0
          %797 = vmatprep.subr.mxu0 0.0
          %798 = vmatpush1.msra.mxu0 0.0
          %799 = vmatprep.subr.mxu0 0.0
          %800 = vmatpush1.msra.mxu0 0.0
          %801 = vmatprep.subr.mxu0 0.0
          %802 = vmatpush1.msra.mxu0 0.0
          %803 = vmatprep.subr.mxu0 0.0
          %804 = vmatpush1.msra.mxu0 0.0
          %805 = vmatprep.subr.mxu0 0.0
          %806 = vmatpush1.msra.mxu0 0.0
          %807 = vmatprep.subr.mxu0 0.0
          %808 = vmatpush1.msra.mxu0 0.0
          %809 = vmatprep.subr.mxu0 0.0
          %810 = vmatpush1.msra.mxu0 0.0
          %811 = vmatprep.subr.mxu0 0.0
          %812 = vmatpush1.msra.mxu0 0.0
          %813 = vmatprep.subr.mxu0 0.0
          %814 = vmatpush1.msra.mxu0 0.0
          %815 = vmatprep.subr.mxu0 0.0
          %816 = vmatpush1.msra.mxu0 0.0
          %817 = vmatprep.subr.mxu0 0.0
          %818 = vmatpush1.msra.mxu0 0.0
          %819 = vmatprep.subr.mxu0 0.0
          %820 = vmatpush1.msra.mxu0 0.0
          %821 = vmatprep.subr.mxu0 0.0
          %822 = vmatpush1.msra.mxu0 0.0
          %823 = vmatprep.subr.mxu0 0.0
          %824 = vmatpush1.msra.mxu0 0.0
          %825 = vmatprep.mubr.f32.mxu0 0.0
          %826 = vmatmul.mubr.f32.gmra.mrb[0].mxu0 %v714
          %v827 = vpop.f32.mrb[0].mxu0
          %v828 = vadd.f32 0.0, %v827
          %v829 = vpop.f32.mrb[0].mxu0
          %830 = vmatprep.mubr.f32.mxu0 0.0
          %831 = vmatmul.mubr.f32.gmra.mrb[0].mxu0 %v717
          %v832 = vpop.f32.mrb[0].mxu0
          %v833 = vadd.f32 0.0, %v832
          %v834 = vpop.f32.mrb[0].mxu0
          %835 = vmatprep.mubr.f32.mxu0 0.0
          %836 = vmatmul.mubr.f32.gmra.mrb[0].mxu0 %v720
          %v837 = vpop.f32.mrb[0].mxu0
          %v838 = vadd.f32 0.0, %v837
          %v839 = vpop.f32.mrb[0].mxu0
          %840 = vmatprep.mubr.f32.mxu0 0.0
          %841 = vmatmul.mubr.f32.gmra.mrb[0].mxu0 %v723
          %v842 = vpop.f32.mrb[0].mxu0
          %v843 = vadd.f32 0.0, %v842
          %v844 = vpop.f32.mrb[0].mxu0
          %845 = vmatprep.mubr.f32.mxu0 0.0
          %846 = vmatmul.mubr.f32.gmra.mrb[0].mxu0 %v726
          %v847 = vpop.f32.mrb[0].mxu0
          %v848 = vadd.f32 0.0, %v847
          %v849 = vpop.f32.mrb[0].mxu0
          %850 = vmatprep.mubr.f32.mxu0 0.0
          %851 = vmatmul.mubr.f32.gmra.mrb[0].mxu0 %v729
          %v852 = vpop.f32.mrb[0].mxu0
          %v853 = vadd.f32 0.0, %v852
          %v854 = vpop.f32.mrb[0].mxu0
          %855 = vmatprep.mubr.f32.mxu0 0.0
          %856 = vmatmul.mubr.f32.gmra.mrb[0].mxu0 %v732
          %v857 = vpop.f32.mrb[0].mxu0
          %v858 = vadd.f32 0.0, %v857
          %v859 = vpop.f32.mrb[0].mxu0
          %860 = vmatprep.mubr.f32.mxu0 0.0
          %861 = vmatmul.mubr.f32.gmra.mrb[0].mxu0 %v735
          %v862 = vpop.f32.mrb[0].mxu0
          %v863 = vadd.f32 0.0, %v862
          %v864 = vpop.f32.mrb[0].mxu0
          %865 = vmatprep.mubr.f32.mxu0 0.0
          %866 = vmatmul.mubr.f32.gmra.mrb[0].mxu0 %v738
          %v867 = vpop.f32.mrb[0].mxu0
          %v868 = vadd.f32 0.0, %v867
          %v869 = vpop.f32.mrb[0].mxu0
          %870 = vmatprep.mubr.f32.mxu0 0.0
          %871 = vmatmul.mubr.f32.gmra.mrb[0].mxu0 %v741
          %v872 = vpop.f32.mrb[0].mxu0
          %v873 = vadd.f32 0.0, %v872
          %v874 = vpop.f32.mrb[0].mxu0
          %875 = vmatprep.mubr.f32.mxu0 0.0
          %876 = vmatmul.mubr.f32.gmra.mrb[0].mxu0 %v744
          %v877 = vpop.f32.mrb[0].mxu0
          %v878 = vadd.f32 0.0, %v877
          %v879 = vpop.f32.mrb[0].mxu0
          %880 = vmatprep.mubr.f32.mxu0 0.0
          %881 = vmatmul.mubr.f32.gmra.mrb[0].mxu0 %v747
          %v882 = vpop.f32.mrb[0].mxu0
          %v883 = vadd.f32 0.0, %v882
          %v884 = vpop.f32.mrb[0].mxu0
          %885 = vmatprep.mubr.f32.mxu0 0.0
          %886 = vmatmul.mubr.f32.gmra.mrb[0].mxu0 %v750
          %v887 = vpop.f32.mrb[0].mxu0
          %v888 = vadd.f32 0.0, %v887
          %v889 = vpop.f32.mrb[0].mxu0
          %890 = vmatprep.mubr.f32.mxu0 0.0
          %891 = vmatmul.mubr.f32.gmra.mrb[0].mxu0 %v753
          %v892 = vpop.f32.mrb[0].mxu0
          %v893 = vadd.f32 0.0, %v892
          %v894 = vpop.f32.mrb[0].mxu0
          %895 = vmatprep.mubr.f32.mxu0 0.0
          %896 = vmatmul.mubr.f32.gmra.mrb[0].mxu0 %v756
          %v897 = vpop.f32.mrb[0].mxu0
          %v898 = vadd.f32 0.0, %v897
          %v899 = vpop.f32.mrb[0].mxu0
          %900 = vmatprep.mubr.f32.mxu0 0.0
          %901 = vmatmul.mubr.f32.gmra.mrb[0].mxu0 %v759
          %v902 = vpop.f32.mrb[0].mxu0
          %v903 = vadd.f32 0.0, %v902
          %v904 = vpop.f32.mrb[0].mxu0
          %905 = vdwg.mxu0
          %vm906 = vcmask 7168
          %907 = vst.msk [vmem:[%s369] sm:$0xff] %vm906, %v828
          %908 = vst.msk [vmem:[%s369 + $0x8] sm:$0xff] %vm906, %v833
          %909 = vst.msk [vmem:[%s369 + $0x10] sm:$0xff] %vm906, %v838
          %910 = vst.msk [vmem:[%s369 + $0x18] sm:$0xff] %vm906, %v843
          %911 = vst.msk [vmem:[%s369 + $0x20] sm:$0xff] %vm906, %v848
          %912 = vst.msk [vmem:[%s369 + $0x28] sm:$0xff] %vm906, %v853
          %913 = vst.msk [vmem:[%s369 + $0x30] sm:$0xff] %vm906, %v858
          %914 = vst.msk [vmem:[%s369 + $0x38] sm:$0xff] %vm906, %v863
          %915 = vst.msk [vmem:[%s369 + $0x40] sm:$0xff] %vm906, %v868
          %916 = vst.msk [vmem:[%s369 + $0x48] sm:$0xff] %vm906, %v873
          %917 = vst.msk [vmem:[%s369 + $0x50] sm:$0xff] %vm906, %v878
          %918 = vst.msk [vmem:[%s369 + $0x58] sm:$0xff] %vm906, %v883
          %919 = vst.msk [vmem:[%s369 + $0x60] sm:$0xff] %vm906, %v888
          %920 = vst.msk [vmem:[%s369 + $0x68] sm:$0xff] %vm906, %v893
          %921 = vst.msk [vmem:[%s369 + $0x70] sm:$0xff] %vm906, %v898
          %922 = vst.msk [vmem:[%s369 + $0x78] sm:$0xff] %vm906, %v903
          %v923 = vpack.c.bf16 %v693, %v692
          %v924 = vpack.c.bf16 %v695, %v694
          %v925 = vpack.c.bf16 %v697, %v696
          %v926 = vpack.c.bf16 %v699, %v698
          %v927 = vpack.c.bf16 %v701, %v700
          %v928 = vpack.c.bf16 %v703, %v702
          %v929 = vpack.c.bf16 %v705, %v704
          %v930 = vpack.c.bf16 %v707, %v706
          %v931 = vld [vmem:[%s4] sm:$0xf]
          %v932 = vld [vmem:[%s4 + $0x4] sm:$0xf]
          %v933 = vld [vmem:[%s4 + $0x8] sm:$0xf]
          %v934 = vld [vmem:[%s4 + $0xc] sm:$0xf]
          %v935 = vld [vmem:[%s5] sm:$0x1]
          %v937 = vlaneseq
          %v938 = vshrl.u32 %v937, 7
          %v939 = vsub.s32 0, %v938
          %v940 = vrot.slane %v935, %v939
          %v946 = vunpack.c.l.b16 %v931
          %v947 = vunpack.c.l.b16 %v932
          %v948 = vunpack.c.l.b16 %v933
          %v949 = vunpack.c.l.b16 %v934
          %v950 = vpack.c.b16 %v947, %v946
          %v951 = vpack.c.b16 %v949, %v948
          %v955 = vsel %vm712, %v923, 0
          %v958 = vsel %vm712, %v924, 0
          %v961 = vsel %vm712, %v925, 0
          %v964 = vsel %vm712, %v926, 0
          %v967 = vsel %vm712, %v927, 0
          %v970 = vsel %vm712, %v928, 0
          %v973 = vsel %vm712, %v929, 0
          %v976 = vsel %vm712, %v930, 0
          %978 = vmatprep.subr.bf16.mxu0 0
          %979 = vmatpush1.bf16.msra.mxu0 %v950
          %980 = vmatprep.subr.bf16.mxu0 0
          %981 = vmatpush1.bf16.msra.mxu0 %v951
          %982 = vmatprep.subr.bf16.mxu0 0
          %983 = vmatpush1.bf16.msra.mxu0 0
          %984 = vmatprep.subr.bf16.mxu0 0
          %985 = vmatpush1.bf16.msra.mxu0 0
          %986 = vmatprep.subr.bf16.mxu0 0
          %987 = vmatpush1.bf16.msra.mxu0 0
          %988 = vmatprep.subr.bf16.mxu0 0
          %989 = vmatpush1.bf16.msra.mxu0 0
          %990 = vmatprep.subr.bf16.mxu0 0
          %991 = vmatpush1.bf16.msra.mxu0 0
          %992 = vmatprep.subr.bf16.mxu0 0
          %993 = vmatpush1.bf16.msra.mxu0 0
          %994 = vmatprep.subr.bf16.mxu0 0
          %995 = vmatpush1.bf16.msra.mxu0 0
          %996 = vmatprep.subr.bf16.mxu0 0
          %997 = vmatpush1.bf16.msra.mxu0 0
          %998 = vmatprep.subr.bf16.mxu0 0
          %999 = vmatpush1.bf16.msra.mxu0 0
          %1000 = vmatprep.subr.bf16.mxu0 0
          %1001 = vmatpush1.bf16.msra.mxu0 0
          %1002 = vmatprep.subr.bf16.mxu0 0
          %1003 = vmatpush1.bf16.msra.mxu0 0
          %1004 = vmatprep.subr.bf16.mxu0 0
          %1005 = vmatpush1.bf16.msra.mxu0 0
          %1006 = vmatprep.subr.bf16.mxu0 0
          %1007 = vmatpush1.bf16.msra.mxu0 0
          %1008 = vmatprep.subr.bf16.mxu0 0
          %1009 = vmatpush1.bf16.msra.mxu0 0
          %1010 = vmatprep.mubr.bf16.mxu0 0
          %1011 = vmatmul.mubr.bf16.gmra.mrb[0].mxu0 %v955
          %v1012 = vpop.f32.mrb[0].mxu0
          %v1013 = vadd.f32 %v940, %v1012
          %v1014 = vpop.f32.mrb[0].mxu0
          %v1015 = vpop.f32.mrb[0].mxu0
          %v1016 = vadd.f32 %v940, %v1015
          %v1017 = vpop.f32.mrb[0].mxu0
          %1018 = vmatprep.mubr.bf16.mxu0 0
          %1019 = vmatmul.mubr.bf16.gmra.mrb[0].mxu0 %v958
          %v1020 = vpop.f32.mrb[0].mxu0
          %v1021 = vadd.f32 %v940, %v1020
          %v1022 = vpop.f32.mrb[0].mxu0
          %v1023 = vpop.f32.mrb[0].mxu0
          %v1024 = vadd.f32 %v940, %v1023
          %v1025 = vpop.f32.mrb[0].mxu0
          %1026 = vmatprep.mubr.bf16.mxu0 0
          %1027 = vmatmul.mubr.bf16.gmra.mrb[0].mxu0 %v961
          %v1028 = vpop.f32.mrb[0].mxu0
          %v1029 = vadd.f32 %v940, %v1028
          %v1030 = vpop.f32.mrb[0].mxu0
          %v1031 = vpop.f32.mrb[0].mxu0
          %v1032 = vadd.f32 %v940, %v1031
          %v1033 = vpop.f32.mrb[0].mxu0
          %1034 = vmatprep.mubr.bf16.mxu0 0
          %1035 = vmatmul.mubr.bf16.gmra.mrb[0].mxu0 %v964
          %v1036 = vpop.f32.mrb[0].mxu0
          %v1037 = vadd.f32 %v940, %v1036
          %v1038 = vpop.f32.mrb[0].mxu0
          %v1039 = vpop.f32.mrb[0].mxu0
          %v1040 = vadd.f32 %v940, %v1039
          %v1041 = vpop.f32.mrb[0].mxu0
          %1042 = vmatprep.mubr.bf16.mxu0 0
          %1043 = vmatmul.mubr.bf16.gmra.mrb[0].mxu0 %v967
          %v1044 = vpop.f32.mrb[0].mxu0
          %v1045 = vadd.f32 %v940, %v1044
          %v1046 = vpop.f32.mrb[0].mxu0
          %v1047 = vpop.f32.mrb[0].mxu0
          %v1048 = vadd.f32 %v940, %v1047
          %v1049 = vpop.f32.mrb[0].mxu0
          %1050 = vmatprep.mubr.bf16.mxu0 0
          %1051 = vmatmul.mubr.bf16.gmra.mrb[0].mxu0 %v970
          %v1052 = vpop.f32.mrb[0].mxu0
          %v1053 = vadd.f32 %v940, %v1052
          %v1054 = vpop.f32.mrb[0].mxu0
          %v1055 = vpop.f32.mrb[0].mxu0
          %v1056 = vadd.f32 %v940, %v1055
          %v1057 = vpop.f32.mrb[0].mxu0
          %1058 = vmatprep.mubr.bf16.mxu0 0
          %1059 = vmatmul.mubr.bf16.gmra.mrb[0].mxu0 %v973
          %v1060 = vpop.f32.mrb[0].mxu0
          %v1061 = vadd.f32 %v940, %v1060
          %v1062 = vpop.f32.mrb[0].mxu0
          %v1063 = vpop.f32.mrb[0].mxu0
          %v1064 = vadd.f32 %v940, %v1063
          %v1065 = vpop.f32.mrb[0].mxu0
          %1066 = vmatprep.mubr.bf16.mxu0 0
          %1067 = vmatmul.mubr.bf16.gmra.mrb[0].mxu0 %v976
          %v1068 = vpop.f32.mrb[0].mxu0
          %v1069 = vadd.f32 %v940, %v1068
          %v1070 = vpop.f32.mrb[0].mxu0
          %v1071 = vpop.f32.mrb[0].mxu0
          %v1072 = vadd.f32 %v940, %v1071
          %v1073 = vpop.f32.mrb[0].mxu0
          %1074 = vdwg.mxu0
          %v1075 = vpack.c.bf16 %v1016, %v1013
          %v1076 = vpack.c.bf16 %v1024, %v1021
          %v1077 = vpack.c.bf16 %v1032, %v1029
          %v1078 = vpack.c.bf16 %v1040, %v1037
          %v1079 = vpack.c.bf16 %v1048, %v1045
          %v1080 = vpack.c.bf16 %v1056, %v1053
          %v1081 = vpack.c.bf16 %v1064, %v1061
          %v1082 = vpack.c.bf16 %v1072, %v1069
          %v1091 = vunpack.c.l.b16 %v1075
          %v1092 = vunpack.c.h.b16 %v1075
          %v1093 = vunpack.c.l.b16 %v1076
          %v1094 = vunpack.c.h.b16 %v1076
          %v1095 = vunpack.c.l.b16 %v1077
          %v1096 = vunpack.c.h.b16 %v1077
          %v1097 = vunpack.c.l.b16 %v1078
          %v1098 = vunpack.c.h.b16 %v1078
          %v1099 = vunpack.c.l.b16 %v1079
          %v1100 = vunpack.c.h.b16 %v1079
          %v1101 = vunpack.c.l.b16 %v1080
          %v1102 = vunpack.c.h.b16 %v1080
          %v1103 = vunpack.c.l.b16 %v1081
          %v1104 = vunpack.c.h.b16 %v1081
          %v1105 = vunpack.c.l.b16 %v1082
          %v1106 = vunpack.c.h.b16 %v1082
          %v1107 = vpack.c.b16 %v1091, %v1091
          %v1108 = vpack.c.b16 %v1092, %v1092
          %v1109 = vpack.c.b16 %v1093, %v1093
          %v1110 = vpack.c.b16 %v1094, %v1094
          %v1111 = vpack.c.b16 %v1095, %v1095
          %v1112 = vpack.c.b16 %v1096, %v1096
          %v1113 = vpack.c.b16 %v1097, %v1097
          %v1114 = vpack.c.b16 %v1098, %v1098
          %v1115 = vpack.c.b16 %v1099, %v1099
          %v1116 = vpack.c.b16 %v1100, %v1100
          %v1117 = vpack.c.b16 %v1101, %v1101
          %v1118 = vpack.c.b16 %v1102, %v1102
          %v1119 = vpack.c.b16 %v1103, %v1103
          %v1120 = vpack.c.b16 %v1104, %v1104
          %v1121 = vpack.c.b16 %v1105, %v1105
          %v1122 = vpack.c.b16 %v1106, %v1106
          %vm1139 = vcmask 257024
          %1140 = vst.msk [vmem:[%s363] sm:$0xf] %vm1139, %v1107
          %1141 = vst.msk [vmem:[%s363 + $0x4] sm:$0xf] %vm1139, %v1108
          %1142 = vst.msk [vmem:[%s363 + $0x8] sm:$0xf] %vm1139, %v1109
          %1143 = vst.msk [vmem:[%s363 + $0xc] sm:$0xf] %vm1139, %v1110
          %1144 = vst.msk [vmem:[%s363 + $0x10] sm:$0xf] %vm1139, %v1111
          %1145 = vst.msk [vmem:[%s363 + $0x14] sm:$0xf] %vm1139, %v1112
          %1146 = vst.msk [vmem:[%s363 + $0x18] sm:$0xf] %vm1139, %v1113
          %1147 = vst.msk [vmem:[%s363 + $0x1c] sm:$0xf] %vm1139, %v1114
          %1148 = vst.msk [vmem:[%s363 + $0x20] sm:$0xf] %vm1139, %v1115
          %1149 = vst.msk [vmem:[%s363 + $0x24] sm:$0xf] %vm1139, %v1116
          %1150 = vst.msk [vmem:[%s363 + $0x28] sm:$0xf] %vm1139, %v1117
          %1151 = vst.msk [vmem:[%s363 + $0x2c] sm:$0xf] %vm1139, %v1118
          %1152 = vst.msk [vmem:[%s363 + $0x30] sm:$0xf] %vm1139, %v1119
          %1153 = vst.msk [vmem:[%s363 + $0x34] sm:$0xf] %vm1139, %v1120
          %1154 = vst.msk [vmem:[%s363 + $0x38] sm:$0xf] %vm1139, %v1121
          %1155 = vst.msk [vmem:[%s363 + $0x3c] sm:$0xf] %vm1139, %v1122
        $region56: #{gpr_sparse_forward.2} parent=39 // pred_fallthru
          _
        %s1156 = smul.u32 16, %s37
        %p1157 = scmp.lt.s32.totalorder %s1156, 63
        %s1158 = scalar_select %p1157, %s1156, 63
        %s1159 = smul.addr %s1158, 4
        %s1160 = scalar_lea.vmem %s7, %s1159
        %s1161 = smul.u32 16, %s37
        %p1162 = scmp.lt.s32.totalorder %s1161, 63
        %s1163 = scalar_select %p1162, %s1161, 63
        %s1164 = smul.addr %s1163, 8
        %s1165 = scalar_lea.vmem %s8, %s1164
        // Predicated region
        $region57: #{gpr_sparse_forward.2} parent=39 // pred_check
          %p1166 = pneg %p192
        $region58: #{gpr_sparse_forward.2} parent=39 // pred_check_branch
          %1168 = sbr.rel (%p1166) target = $region60
        $region59: #{gpr_sparse_forward.2} parent=39 // pred_region
          %s1169 = smul.u32 16, %s37
        $region60: #{gpr_sparse_forward.2} parent=39 // pred_fallthru
          _
        // Predicated region
        $region61: #{gpr_sparse_forward.2} parent=39 // pred_check
          %p1170 = pneg %p218
        $region62: #{gpr_sparse_forward.2} parent=39 // pred_check_branch
          %1172 = sbr.rel (%p1170) target = $region64
        $region63: #{gpr_sparse_forward.2} parent=39 // pred_region
          %s1173 = smul.u32 16, %s37
        $region64: #{gpr_sparse_forward.2} parent=39 // pred_fallthru
          _
      $region40: #{gpr_sparse_forward.2} parent=5 // pred_fallthru
        _
      %p1174 = scmp.le.s32.totalorder 2, %s28
      // Predicated region
      $region65: #{gpr_sparse_forward.2} parent=5 // pred_check
        %p1175 = pneg %p1174
      $region66: #{gpr_sparse_forward.2} parent=5 // pred_check_branch
        %1177 = sbr.rel (%p1175) target = $region68
      $region67: #{gpr_sparse_forward.2} parent=5 // pred_region
        %s1178 = ssub.s32 %s28, 2
        // Predicated region
        $region69: #{gpr_sparse_forward.2} parent=67 // pred_check
          %p1179 = pneg %p198
        $region70: #{gpr_sparse_forward.2} parent=67 // pred_check_branch
          %1181 = sbr.rel (%p1179) target = $region72
        $region71: #{gpr_sparse_forward.2} parent=67 // pred_region
          %s1182 = smul.u32 16, %s39
          %p1183 = scmp.lt.s32.totalorder %s1182, 63
          %s1184 = scalar_select %p1183, %s1182, 63
          %s1185 = smul.addr %s1184, 4
          %s1186 = scalar_lea.vmem %s7, %s1185
        $region72: #{gpr_sparse_forward.2} parent=67 // pred_fallthru
          _
        // Predicated region
        $region73: #{gpr_sparse_forward.2} parent=67 // pred_check
          %p1187 = pneg %p224
        $region74: #{gpr_sparse_forward.2} parent=67 // pred_check_branch
          %1189 = sbr.rel (%p1187) target = $region76
        $region75: #{gpr_sparse_forward.2} parent=67 // pred_region
          %s1190 = smul.u32 16, %s39
          %p1191 = scmp.lt.s32.totalorder %s1190, 63
          %s1192 = scalar_select %p1191, %s1190, 63
          %s1193 = smul.addr %s1192, 8
          %s1194 = scalar_lea.vmem %s8, %s1193
        $region76: #{gpr_sparse_forward.2} parent=67 // pred_fallthru
          _
      $region68: #{gpr_sparse_forward.2} parent=5 // pred_fallthru
        _
    $region6: #{gpr_sparse_forward.2} parent=1 // loop_footer
      %s32 = sadd.s32 1, %s28
    $region7: #{gpr_sparse_forward.2} parent=1 // loop_footer_branch
      %27 = sbr.rel target = $region3
    $region8: #{gpr_sparse_forward.2} parent=1 // loop_exit
      _
    %1195 = vsyncpa [#allocation7], 1
    %s1196 = scalar_lea.sflag [#allocation7], 1
    %1197 = vsyncpa %s1196, 1

</llo_original>
